<compile_context>
chip_gen: v5e
topology: v5e:2x2
jax: 0.10.0
libtpu: 0.0.40
codegen_flags: <defaults>
</compile_context>

<pallas_src>
import functools

import jax
import jax.numpy as jnp
import numpy as np
from jax.experimental import pallas as pl
from jax.experimental.pallas import tpu as pltpu

_BN_EPS = 1e-5
_LANES = 128


def _round_up(x, m):
    return (x + m - 1) // m * m


# ---------------------------------------------------------------------------
# Fused kernel
# ---------------------------------------------------------------------------
def _spark_module_compute(x, wsq, bsq, dwp, wexp, bexp,
                          valid, nfc, nlc, nfr, nlr, width):
    """One Spark_Module (eval-mode BN folded) on a lane-dense (Cin, P_pad) value.

    wsq/bsq: squeeze 1x1 (+BN) weights, Csq padded to a multiple of 8 (zero rows).
    dwp:     (Csq_pad, 8) packed depthwise taps [w13*3, b13, w31*bn*3, b31*bn+shift].
    wexp/bexp: block-diagonal fused expand weights (Cout, 2*Csq_pad) acting on
               concat([s, u]) so both branches are one matmul / one aligned slab.
    """
    lanes = x.shape[-1]

    # squeeze: 1x1 conv (+folded BN) + ReLU, spatial on the wide MXU axis.
    s = jnp.maximum(jnp.dot(wsq, x, preferred_element_type=jnp.float32) + bsq, 0.0)
    s = s * valid                       # keep padded lanes exactly zero (bounded tail)

    # depthwise (1,3), pad (0,1), + ReLU.  Neighbours via lane roll (XLU) + masks.
    left = pltpu.roll(s, 1, axis=1) * nfc                 # s[., p-1]
    right = pltpu.roll(s, lanes - 1, axis=1) * nlc        # s[., p+1]
    t = left * dwp[:, 0:1] + s * dwp[:, 1:2] + right * dwp[:, 2:3] + dwp[:, 3:4]
    t = jnp.maximum(t, 0.0)

    # depthwise (3,1), pad (1,0), + folded BN + ReLU.
    up = pltpu.roll(t, width, axis=1) * nfr               # t[., p-W]
    down = pltpu.roll(t, lanes - width, axis=1) * nlr     # t[., p+W]
    u = up * dwp[:, 4:5] + t * dwp[:, 5:6] + down * dwp[:, 6:7] + dwp[:, 7:8]
    u = jnp.maximum(u, 0.0)

    # Fused expand_1x1 + expand_kxk-1x1 (+folded BN) + ReLU as one block matmul:
    # channel concat is produced directly as an aligned (Cout, P) slab.
    su = jnp.concatenate([s, u], axis=0)                  # (2*Csq_pad, P), 8-aligned
    return jnp.maximum(
        jnp.dot(wexp, su, preferred_element_type=jnp.float32) + bexp, 0.0)


def spark_down_kernel(x_ref, pool_ref, m_ref,
                      wsq1_ref, bsq1_ref, dwp1_ref, wexp1_ref, bexp1_ref,
                      wsq2_ref, bsq2_ref, dwp2_ref, wexp2_ref, bexp2_ref,
                      o_ref, *, width):
    """Fused AvgPool2d(2,2) -> Spark_Module -> Spark_Module for one batch element.

    x_ref:    (C, H*W)   lane-dense flattened input.
    pool_ref: (H*W, P_pad) 2x2 average-pool + flatten matrix (zero tail columns).
    m_ref:    (5, P_pad) masks [valid, not_first_col, not_last_col,
                                not_first_row, not_last_row].
    o_ref:    (2C, P_pad) lane-dense output slab.
    """
    m = m_ref[...]
    valid, nfc, nlc, nfr, nlr = m[0:1], m[1:2], m[2:3], m[3:4], m[4:5]

    # AvgPool2d(2,2) + flatten to lane-dense (C, P_pad) in one MXU matmul;
    # tail lanes come out exactly zero.
    pooled = jnp.dot(x_ref[...], pool_ref[...], preferred_element_type=jnp.float32)

    y = _spark_module_compute(pooled, wsq1_ref[...], bsq1_ref[...], dwp1_ref[...],
                              wexp1_ref[...], bexp1_ref[...],
                              valid, nfc, nlc, nfr, nlr, width)
    y = _spark_module_compute(y, wsq2_ref[...], bsq2_ref[...], dwp2_ref[...],
                              wexp2_ref[...], bexp2_ref[...],
                              valid, nfc, nlc, nfr, nlr, width)

    o_ref[...] = y.astype(o_ref.dtype)   # single aligned, 128-lane-dense store


# ---------------------------------------------------------------------------
# Host-side constants / folding
# ---------------------------------------------------------------------------
def _pool_matrix(h, w, p_pad):
    """(H*W, P_pad) matrix: 2x2 average pool + flatten; zero columns past Ho*Wo."""
    ho, wo = h // 2, w // 2
    m = np.zeros((h * w, p_pad), np.float32)
    rr, qq = np.meshgrid(np.arange(ho), np.arange(wo), indexing="ij")
    cols = (rr * wo + qq).ravel()
    for dh in (0, 1):
        for dw_ in (0, 1):
            rows = ((2 * rr + dh) * w + (2 * qq + dw_)).ravel()
            m[rows, cols] = 0.25
    return jnp.asarray(m)


def _boundary_masks(h, w, p_pad):
    pos = np.arange(p_pad)
    col = pos % w
    row = pos // w
    valid = pos < h * w
    m = np.stack([
        valid,                      # lane holds a real pixel
        (col != 0) & valid,         # neighbour p-1 inside the image row
        (col != w - 1) & valid,     # neighbour p+1 inside the image row
        (row != 0) & valid,         # neighbour p-W inside the image
        (row != h - 1) & valid,     # neighbour p+W inside the image
    ]).astype(np.float32)
    return jnp.asarray(m)


def _bn_scale_shift(bnp):
    gamma, beta, mean, var = bnp
    s = gamma / jnp.sqrt(var + _BN_EPS)
    return s, beta - mean * s


def _fold_module(p):
    """Fold eval-mode BNs into weights; pad Csq to a multiple of 8; fuse the two
    expand 1x1 convs into one block-diagonal matrix acting on concat([s, u])."""
    s_sq, t_sq = _bn_scale_shift(p['bn_sq'])
    s_e1, t_e1 = _bn_scale_shift(p['bn_e1'])
    s_ek, t_ek = _bn_scale_shift(p['bn_ek'])
    s_d2, t_d2 = _bn_scale_shift(p['bn_d2'])

    csq, cin = p['wsq'].shape
    ce1, cek = p['we1'].shape[0], p['wek'].shape[0]
    csq_p = _round_up(csq, 8)
    cout = ce1 + cek

    wsq = jnp.zeros((csq_p, cin), jnp.float32).at[:csq].set(p['wsq'] * s_sq[:, None])
    bsq = jnp.zeros((csq_p, 1), jnp.float32).at[:csq, 0].set(p['bsq'] * s_sq + t_sq)

    dwp = jnp.zeros((csq_p, 8), jnp.float32)
    dwp = dwp.at[:csq, 0:3].set(p['wd1'])
    dwp = dwp.at[:csq, 3].set(p['bd1'])
    dwp = dwp.at[:csq, 4:7].set(p['wd2'] * s_d2[:, None])
    dwp = dwp.at[:csq, 7].set(p['bd2'] * s_d2 + t_d2)

    wexp = jnp.zeros((cout, 2 * csq_p), jnp.float32)
    wexp = wexp.at[:ce1, :csq].set(p['we1'] * s_e1[:, None])
    wexp = wexp.at[ce1:, csq_p:csq_p + csq].set(p['wek'] * s_ek[:, None])
    bexp = jnp.concatenate([p['be1'] * s_e1 + t_e1,
                            p['bek'] * s_ek + t_ek])[:, None]
    return (wsq, bsq, dwp, wexp, bexp)


def _const_specs(arrays, buffered):
    specs = []
    for a in arrays:
        idx = (lambda nd: (lambda i: (0,) * nd))(a.ndim)
        if buffered:
            # Constant index map -> one pipeline buffer is enough (VMEM headroom).
            specs.append(pl.BlockSpec(a.shape, idx, pipeline_mode=pl.Buffered(1)))
        else:
            specs.append(pl.BlockSpec(a.shape, idx))
    return specs


def _vmem_limit_bytes(c, hw, p_pad, cout, csq_p, const_bytes):
    in_block = 4 * c * hw
    out_block = 4 * cout * p_pad
    # live temporaries per grid step: pooled + (s,left,right,t,up,down,u,su,y) x 2 modules
    temps = 4 * p_pad * (c + 2 * (10 * csq_p + cout))
    need = 2 * in_block + 2 * out_block + 2 * const_bytes + temps + (8 << 20)
    try:
        phys = int(pltpu.get_tpu_info().vmem_capacity_bytes)
    except Exception:
        phys = 128 << 20
    cap = (48 << 20) if phys <= (64 << 20) else (112 << 20)
    return int(min(max(need, 32 << 20), cap))


# ---------------------------------------------------------------------------
# Wrapper
# ---------------------------------------------------------------------------
def spark_down_block(x, params):
    """x: (N, C, H, W) float32 NCHW -> (N, 2C, H//2, W//2)."""
    n, c, h, w = x.shape
    ho, wo = h // 2, w // 2
    p = ho * wo
    p_pad = _round_up(p, _LANES)
    hw = h * w

    x_flat = x.reshape(n, c, hw)                 # free HBM reshape, lane-dense input

    pool = _pool_matrix(h, w, p_pad)             # (H*W, P_pad)
    masks = _boundary_masks(ho, wo, p_pad)       # (5, P_pad)
    m1 = _fold_module(params['m1'])
    m2 = _fold_module(params['m2'])
    cout = m2[3].shape[0]                        # = 2C
    csq_p = max(m1[0].shape[0], m2[0].shape[0])

    const_args = (pool, masks) + m1 + m2
    const_bytes = sum(4 * int(a.size) for a in const_args)
    vmem_limit = _vmem_limit_bytes(c, hw, p_pad, cout, csq_p, const_bytes)

    def _call(buffered):
        in_specs = ([pl.BlockSpec((pl.Squeezed(), c, hw), lambda i: (i, 0, 0))]
                    + _const_specs(const_args, buffered))
        return pl.pallas_call(
            functools.partial(spark_down_kernel, width=wo),
            out_shape=jax.ShapeDtypeStruct((n, cout, p_pad), x.dtype),
            grid=(n,),
            in_specs=in_specs,
            out_specs=pl.BlockSpec((pl.Squeezed(), cout, p_pad),
                                   lambda i: (i, 0, 0)),
            compiler_params=pltpu.CompilerParams(
                dimension_semantics=("parallel",),
                vmem_limit_bytes=vmem_limit),
        )(x_flat, *const_args)

    try:
        out = jax.block_until_ready(_call(True))
    except Exception:
        # Fallback if this JAX build rejects pipeline_mode=pl.Buffered(1).
        out = _call(False)

    return out[:, :, :p].reshape(n, cout, ho, wo)


# ---------------------------------------------------------------------------
# Synthetic parameters + pure-JAX reference (unfused, for verification)
# ---------------------------------------------------------------------------
def init_params(key, c):
    def conv1x1(k, cout, cin):
        k1, k2 = jax.random.split(k)
        wgt = jax.random.normal(k1, (cout, cin), jnp.float32) / np.sqrt(cin)
        return wgt, 0.1 * jax.random.normal(k2, (cout,), jnp.float32)

    def dwconv(k, ch):
        k1, k2 = jax.random.split(k)
        return (0.5 * jax.random.normal(k1, (ch, 3), jnp.float32),
                0.1 * jax.random.normal(k2, (ch,), jnp.float32))

    def bn(k, ch):
        k1, k2, k3, k4 = jax.random.split(k, 4)
        gamma = 1.0 + 0.1 * jax.random.normal(k1, (ch,), jnp.float32)
        beta = 0.1 * jax.random.normal(k2, (ch,), jnp.float32)
        mean = 0.1 * jax.random.normal(k3, (ch,), jnp.float32)
        var = jax.random.uniform(k4, (ch,), jnp.float32, 0.5, 1.5)
        return gamma, beta, mean, var

    def spark_module(k, cin, csq, ce1, cek):
        ks = jax.random.split(k, 9)
        wsq, bsq = conv1x1(ks[0], csq, cin)
        we1, be1 = conv1x1(ks[1], ce1, csq)
        wek, bek = conv1x1(ks[2], cek, csq)
        wd1, bd1 = dwconv(ks[3], csq)
        wd2, bd2 = dwconv(ks[4], csq)
        return dict(wsq=wsq, bsq=bsq, bn_sq=bn(ks[5], csq),
                    we1=we1, be1=be1, bn_e1=bn(ks[6], ce1),
                    wd1=wd1, bd1=bd1,
                    wd2=wd2, bd2=bd2, bn_d2=bn(ks[7], csq),
                    wek=wek, bek=bek, bn_ek=bn(ks[8], cek))

    k1, k2 = jax.random.split(key)
    csq = c // 2
    return dict(m1=spark_module(k1, c, csq, c, c),
                m2=spark_module(k2, 2 * c, csq, c, c))


def _bn_ref(x, bnp):
    gamma, beta, mean, var = bnp
    inv = gamma / jnp.sqrt(var + _BN_EPS)
    return (x - mean[None, :, None, None]) * inv[None, :, None, None] \
        + beta[None, :, None, None]


def _conv1x1_ref(x, w, b):
    return jnp.einsum('oc,nchw->nohw', w, x) + b[None, :, None, None]


def _dw13_ref(x, w, b):
    xp = jnp.pad(x, ((0, 0), (0, 0), (0, 0), (1, 1)))
    return (xp[..., :-2] * w[:, 0][None, :, None, None]
            + xp[..., 1:-1] * w[:, 1][None, :, None, None]
            + xp[..., 2:] * w[:, 2][None, :, None, None]) + b[None, :, None, None]


def _dw31_ref(x, w, b):
    xp = jnp.pad(x, ((0, 0), (0, 0), (1, 1), (0, 0)))
    return (xp[:, :, :-2, :] * w[:, 0][None, :, None, None]
            + xp[:, :, 1:-1, :] * w[:, 1][None, :, None, None]
            + xp[:, :, 2:, :] * w[:, 2][None, :, None, None]) + b[None, :, None, None]


def _spark_module_ref(x, p):
    relu = lambda v: jnp.maximum(v, 0.0)
    s = relu(_bn_ref(_conv1x1_ref(x, p['wsq'], p['bsq']), p['bn_sq']))
    a = relu(_bn_ref(_conv1x1_ref(s, p['we1'], p['be1']), p['bn_e1']))
    t = relu(_dw13_ref(s, p['wd1'], p['bd1']))
    t = relu(_bn_ref(_dw31_ref(t, p['wd2'], p['bd2']), p['bn_d2']))
    b = relu(_bn_ref(_conv1x1_ref(t, p['wek'], p['bek']), p['bn_ek']))
    return jnp.concatenate([a, b], axis=1)


def reference(x, params):
    n, c, h, w = x.shape
    pooled = x.reshape(n, c, h // 2, 2, w // 2, 2).mean(axis=(3, 5))
    y = _spark_module_ref(pooled, params['m1'])
    return _spark_module_ref(y, params['m2'])


if __name__ == "__main__":
    key = jax.random.PRNGKey(0)
    kx, kp = jax.random.split(key)
    N, C, H, W = 2, 4, 16, 16          # Spark_Down_Block(C=4, k=3)

    x = jax.random.normal(kx, (N, C, H, W), jnp.float32)
    params = init_params(kp, C)

    out = jax.block_until_ready(spark_down_block(x, params))   # (2, 8, 8, 8)

    ref = jax.block_until_ready(reference(x, params))
    np.testing.assert_allclose(np.asarray(out), np.asarray(ref),
                               rtol=1e-4, atol=1e-4)
    print("KERNEL_OK")
</pallas_src>

<mosaic_0001>
module attributes {stable_mosaic.version = 11 : i64} {
  func.func @spark_down_kernel(%arg0: i32, %arg1: memref<1x4x256xf32, #tpu.memory_space<vmem>>, %arg2: memref<256x128xf32, #tpu.memory_space<vmem>>, %arg3: memref<5x128xf32, #tpu.memory_space<vmem>>, %arg4: memref<8x4xf32, #tpu.memory_space<vmem>>, %arg5: memref<8x1xf32, #tpu.memory_space<vmem>>, %arg6: memref<8x8xf32, #tpu.memory_space<vmem>>, %arg7: memref<8x16xf32, #tpu.memory_space<vmem>>, %arg8: memref<8x1xf32, #tpu.memory_space<vmem>>, %arg9: memref<8x8xf32, #tpu.memory_space<vmem>>, %arg10: memref<8x1xf32, #tpu.memory_space<vmem>>, %arg11: memref<8x8xf32, #tpu.memory_space<vmem>>, %arg12: memref<8x16xf32, #tpu.memory_space<vmem>>, %arg13: memref<8x1xf32, #tpu.memory_space<vmem>>, %arg14: memref<1x8x128xf32, #tpu.memory_space<vmem>>) attributes {dimension_semantics = [#tpu.dimension_semantics<parallel>], iteration_bounds = array<i64: 2>, scalar_prefetch = 0 : i64, scratch_operands = 0 : i64, tpu.core_type = #tpu.core_type<tc>, window_params = [{transform_indices = @transform_0, window_bounds = array<i64: 1, 4, 256>}, {pipeline_mode = #tpu.pipeline_mode<synchronous>, transform_indices = @transform_1, window_bounds = array<i64: 256, 128>}, {pipeline_mode = #tpu.pipeline_mode<synchronous>, transform_indices = @transform_2, window_bounds = array<i64: 5, 128>}, {pipeline_mode = #tpu.pipeline_mode<synchronous>, transform_indices = @transform_3, window_bounds = array<i64: 8, 4>}, {pipeline_mode = #tpu.pipeline_mode<synchronous>, transform_indices = @transform_4, window_bounds = array<i64: 8, 1>}, {pipeline_mode = #tpu.pipeline_mode<synchronous>, transform_indices = @transform_5, window_bounds = array<i64: 8, 8>}, {pipeline_mode = #tpu.pipeline_mode<synchronous>, transform_indices = @transform_6, window_bounds = array<i64: 8, 16>}, {pipeline_mode = #tpu.pipeline_mode<synchronous>, transform_indices = @transform_7, window_bounds = array<i64: 8, 1>}, {pipeline_mode = #tpu.pipeline_mode<synchronous>, transform_indices = @transform_8, window_bounds = array<i64: 8, 8>}, {pipeline_mode = #tpu.pipeline_mode<synchronous>, transform_indices = @transform_9, window_bounds = array<i64: 8, 1>}, {pipeline_mode = #tpu.pipeline_mode<synchronous>, transform_indices = @transform_10, window_bounds = array<i64: 8, 8>}, {pipeline_mode = #tpu.pipeline_mode<synchronous>, transform_indices = @transform_11, window_bounds = array<i64: 8, 16>}, {pipeline_mode = #tpu.pipeline_mode<synchronous>, transform_indices = @transform_12, window_bounds = array<i64: 8, 1>}, {transform_indices = @transform_13, window_bounds = array<i64: 1, 8, 128>}]} {
    %c0 = arith.constant 0 : index
    %c0_0 = arith.constant 0 : index
    %0 = vector.load %arg3[%c0, %c0_0] : memref<5x128xf32, #tpu.memory_space<vmem>>, vector<5x128xf32>
    %1 = vector.extract_strided_slice %0 {offsets = [0, 0], sizes = [1, 128], strides = [1, 1]} : vector<5x128xf32> to vector<1x128xf32>
    %2 = vector.extract_strided_slice %0 {offsets = [1, 0], sizes = [1, 128], strides = [1, 1]} : vector<5x128xf32> to vector<1x128xf32>
    %3 = vector.extract_strided_slice %0 {offsets = [2, 0], sizes = [1, 128], strides = [1, 1]} : vector<5x128xf32> to vector<1x128xf32>
    %4 = vector.extract_strided_slice %0 {offsets = [3, 0], sizes = [1, 128], strides = [1, 1]} : vector<5x128xf32> to vector<1x128xf32>
    %5 = vector.extract_strided_slice %0 {offsets = [4, 0], sizes = [1, 128], strides = [1, 1]} : vector<5x128xf32> to vector<1x128xf32>
    %c0_1 = arith.constant 0 : index
    %c0_2 = arith.constant 0 : index
    %c0_3 = arith.constant 0 : index
    %6 = vector.load %arg1[%c0_1, %c0_2, %c0_3] : memref<1x4x256xf32, #tpu.memory_space<vmem>>, vector<1x4x256xf32>
    %7 = vector.shape_cast %6 : vector<1x4x256xf32> to vector<4x256xf32>
    %c0_4 = arith.constant 0 : index
    %c0_5 = arith.constant 0 : index
    %8 = vector.load %arg2[%c0_4, %c0_5] : memref<256x128xf32, #tpu.memory_space<vmem>>, vector<256x128xf32>
    %cst = arith.constant dense<0.000000e+00> : vector<4x128xf32>
    %9 = tpu.matmul %7, %8, %cst {dimension_numbers = #tpu.dot_dimension_numbers<[1], [0], [0], [1], [0, 0, 1, 1], [], []>} : vector<4x256xf32>, vector<256x128xf32>, vector<4x128xf32> -> vector<4x128xf32>
    %c0_6 = arith.constant 0 : index
    %c0_7 = arith.constant 0 : index
    %10 = vector.load %arg4[%c0_6, %c0_7] : memref<8x4xf32, #tpu.memory_space<vmem>>, vector<8x4xf32>
    %c0_8 = arith.constant 0 : index
    %c0_9 = arith.constant 0 : index
    %11 = vector.load %arg5[%c0_8, %c0_9] : memref<8x1xf32, #tpu.memory_space<vmem>>, vector<8x1xf32>
    %c0_10 = arith.constant 0 : index
    %c0_11 = arith.constant 0 : index
    %12 = vector.load %arg6[%c0_10, %c0_11] : memref<8x8xf32, #tpu.memory_space<vmem>>, vector<8x8xf32>
    %c0_12 = arith.constant 0 : index
    %c0_13 = arith.constant 0 : index
    %13 = vector.load %arg7[%c0_12, %c0_13] : memref<8x16xf32, #tpu.memory_space<vmem>>, vector<8x16xf32>
    %c0_14 = arith.constant 0 : index
    %c0_15 = arith.constant 0 : index
    %14 = vector.load %arg8[%c0_14, %c0_15] : memref<8x1xf32, #tpu.memory_space<vmem>>, vector<8x1xf32>
    %cst_16 = arith.constant dense<0.000000e+00> : vector<8x128xf32>
    %15 = tpu.matmul %10, %9, %cst_16 {dimension_numbers = #tpu.dot_dimension_numbers<[1], [0], [0], [1], [0, 0, 1, 1], [], []>} : vector<8x4xf32>, vector<4x128xf32>, vector<8x128xf32> -> vector<8x128xf32>
    %16 = vector.broadcast %11 : vector<8x1xf32> to vector<8x128xf32>
    %17 = arith.addf %15, %16 : vector<8x128xf32>
    %cst_17 = arith.constant 0.000000e+00 : f32
    %18 = vector.broadcast %cst_17 : f32 to vector<8x128xf32>
    %19 = arith.maximumf %17, %18 : vector<8x128xf32>
    %20 = vector.broadcast %1 : vector<1x128xf32> to vector<8x128xf32>
    %21 = arith.mulf %19, %20 : vector<8x128xf32>
    %c1_i32 = arith.constant 1 : i32
    %22 = tpu.dynamic_rotate %21 by %c1_i32 dim 1 : vector<8x128xf32>, i32 -> vector<8x128xf32>
    %23 = vector.broadcast %2 : vector<1x128xf32> to vector<8x128xf32>
    %24 = arith.mulf %22, %23 : vector<8x128xf32>
    %c127_i32 = arith.constant 127 : i32
    %25 = tpu.dynamic_rotate %21 by %c127_i32 dim 1 : vector<8x128xf32>, i32 -> vector<8x128xf32>
    %26 = vector.broadcast %3 : vector<1x128xf32> to vector<8x128xf32>
    %27 = arith.mulf %25, %26 : vector<8x128xf32>
    %28 = vector.extract_strided_slice %12 {offsets = [0, 0], sizes = [8, 1], strides = [1, 1]} : vector<8x8xf32> to vector<8x1xf32>
    %29 = vector.broadcast %28 : vector<8x1xf32> to vector<8x128xf32>
    %30 = arith.mulf %24, %29 : vector<8x128xf32>
    %31 = vector.extract_strided_slice %12 {offsets = [0, 1], sizes = [8, 1], strides = [1, 1]} : vector<8x8xf32> to vector<8x1xf32>
    %32 = vector.broadcast %31 : vector<8x1xf32> to vector<8x128xf32>
    %33 = arith.mulf %21, %32 : vector<8x128xf32>
    %34 = arith.addf %30, %33 : vector<8x128xf32>
    %35 = vector.extract_strided_slice %12 {offsets = [0, 2], sizes = [8, 1], strides = [1, 1]} : vector<8x8xf32> to vector<8x1xf32>
    %36 = vector.broadcast %35 : vector<8x1xf32> to vector<8x128xf32>
    %37 = arith.mulf %27, %36 : vector<8x128xf32>
    %38 = arith.addf %34, %37 : vector<8x128xf32>
    %39 = vector.extract_strided_slice %12 {offsets = [0, 3], sizes = [8, 1], strides = [1, 1]} : vector<8x8xf32> to vector<8x1xf32>
    %40 = vector.broadcast %39 : vector<8x1xf32> to vector<8x128xf32>
    %41 = arith.addf %38, %40 : vector<8x128xf32>
    %cst_18 = arith.constant 0.000000e+00 : f32
    %42 = vector.broadcast %cst_18 : f32 to vector<8x128xf32>
    %43 = arith.maximumf %41, %42 : vector<8x128xf32>
    %c8_i32 = arith.constant 8 : i32
    %44 = tpu.dynamic_rotate %43 by %c8_i32 dim 1 : vector<8x128xf32>, i32 -> vector<8x128xf32>
    %45 = vector.broadcast %4 : vector<1x128xf32> to vector<8x128xf32>
    %46 = arith.mulf %44, %45 : vector<8x128xf32>
    %c120_i32 = arith.constant 120 : i32
    %47 = tpu.dynamic_rotate %43 by %c120_i32 dim 1 : vector<8x128xf32>, i32 -> vector<8x128xf32>
    %48 = vector.broadcast %5 : vector<1x128xf32> to vector<8x128xf32>
    %49 = arith.mulf %47, %48 : vector<8x128xf32>
    %50 = vector.extract_strided_slice %12 {offsets = [0, 4], sizes = [8, 1], strides = [1, 1]} : vector<8x8xf32> to vector<8x1xf32>
    %51 = vector.broadcast %50 : vector<8x1xf32> to vector<8x128xf32>
    %52 = arith.mulf %46, %51 : vector<8x128xf32>
    %53 = vector.extract_strided_slice %12 {offsets = [0, 5], sizes = [8, 1], strides = [1, 1]} : vector<8x8xf32> to vector<8x1xf32>
    %54 = vector.broadcast %53 : vector<8x1xf32> to vector<8x128xf32>
    %55 = arith.mulf %43, %54 : vector<8x128xf32>
    %56 = arith.addf %52, %55 : vector<8x128xf32>
    %57 = vector.extract_strided_slice %12 {offsets = [0, 6], sizes = [8, 1], strides = [1, 1]} : vector<8x8xf32> to vector<8x1xf32>
    %58 = vector.broadcast %57 : vector<8x1xf32> to vector<8x128xf32>
    %59 = arith.mulf %49, %58 : vector<8x128xf32>
    %60 = arith.addf %56, %59 : vector<8x128xf32>
    %61 = vector.extract_strided_slice %12 {offsets = [0, 7], sizes = [8, 1], strides = [1, 1]} : vector<8x8xf32> to vector<8x1xf32>
    %62 = vector.broadcast %61 : vector<8x1xf32> to vector<8x128xf32>
    %63 = arith.addf %60, %62 : vector<8x128xf32>
    %cst_19 = arith.constant 0.000000e+00 : f32
    %64 = vector.broadcast %cst_19 : f32 to vector<8x128xf32>
    %65 = arith.maximumf %63, %64 : vector<8x128xf32>
    %66 = tpu.concatenate %21, %65 in 0 : vector<8x128xf32>, vector<8x128xf32> -> vector<16x128xf32>
    %cst_20 = arith.constant dense<0.000000e+00> : vector<8x128xf32>
    %67 = tpu.matmul %13, %66, %cst_20 {dimension_numbers = #tpu.dot_dimension_numbers<[1], [0], [0], [1], [0, 0, 1, 1], [], []>} : vector<8x16xf32>, vector<16x128xf32>, vector<8x128xf32> -> vector<8x128xf32>
    %68 = vector.broadcast %14 : vector<8x1xf32> to vector<8x128xf32>
    %69 = arith.addf %67, %68 : vector<8x128xf32>
    %cst_21 = arith.constant 0.000000e+00 : f32
    %70 = vector.broadcast %cst_21 : f32 to vector<8x128xf32>
    %71 = arith.maximumf %69, %70 : vector<8x128xf32>
    %c0_22 = arith.constant 0 : index
    %c0_23 = arith.constant 0 : index
    %72 = vector.load %arg9[%c0_22, %c0_23] : memref<8x8xf32, #tpu.memory_space<vmem>>, vector<8x8xf32>
    %c0_24 = arith.constant 0 : index
    %c0_25 = arith.constant 0 : index
    %73 = vector.load %arg10[%c0_24, %c0_25] : memref<8x1xf32, #tpu.memory_space<vmem>>, vector<8x1xf32>
    %c0_26 = arith.constant 0 : index
    %c0_27 = arith.constant 0 : index
    %74 = vector.load %arg11[%c0_26, %c0_27] : memref<8x8xf32, #tpu.memory_space<vmem>>, vector<8x8xf32>
    %c0_28 = arith.constant 0 : index
    %c0_29 = arith.constant 0 : index
    %75 = vector.load %arg12[%c0_28, %c0_29] : memref<8x16xf32, #tpu.memory_space<vmem>>, vector<8x16xf32>
    %c0_30 = arith.constant 0 : index
    %c0_31 = arith.constant 0 : index
    %76 = vector.load %arg13[%c0_30, %c0_31] : memref<8x1xf32, #tpu.memory_space<vmem>>, vector<8x1xf32>
    %cst_32 = arith.constant dense<0.000000e+00> : vector<8x128xf32>
    %77 = tpu.matmul %72, %71, %cst_32 {dimension_numbers = #tpu.dot_dimension_numbers<[1], [0], [0], [1], [0, 0, 1, 1], [], []>} : vector<8x8xf32>, vector<8x128xf32>, vector<8x128xf32> -> vector<8x128xf32>
    %78 = vector.broadcast %73 : vector<8x1xf32> to vector<8x128xf32>
    %79 = arith.addf %77, %78 : vector<8x128xf32>
    %cst_33 = arith.constant 0.000000e+00 : f32
    %80 = vector.broadcast %cst_33 : f32 to vector<8x128xf32>
    %81 = arith.maximumf %79, %80 : vector<8x128xf32>
    %82 = vector.broadcast %1 : vector<1x128xf32> to vector<8x128xf32>
    %83 = arith.mulf %81, %82 : vector<8x128xf32>
    %c1_i32_34 = arith.constant 1 : i32
    %84 = tpu.dynamic_rotate %83 by %c1_i32_34 dim 1 : vector<8x128xf32>, i32 -> vector<8x128xf32>
    %85 = vector.broadcast %2 : vector<1x128xf32> to vector<8x128xf32>
    %86 = arith.mulf %84, %85 : vector<8x128xf32>
    %c127_i32_35 = arith.constant 127 : i32
    %87 = tpu.dynamic_rotate %83 by %c127_i32_35 dim 1 : vector<8x128xf32>, i32 -> vector<8x128xf32>
    %88 = vector.broadcast %3 : vector<1x128xf32> to vector<8x128xf32>
    %89 = arith.mulf %87, %88 : vector<8x128xf32>
    %90 = vector.extract_strided_slice %74 {offsets = [0, 0], sizes = [8, 1], strides = [1, 1]} : vector<8x8xf32> to vector<8x1xf32>
    %91 = vector.broadcast %90 : vector<8x1xf32> to vector<8x128xf32>
    %92 = arith.mulf %86, %91 : vector<8x128xf32>
    %93 = vector.extract_strided_slice %74 {offsets = [0, 1], sizes = [8, 1], strides = [1, 1]} : vector<8x8xf32> to vector<8x1xf32>
    %94 = vector.broadcast %93 : vector<8x1xf32> to vector<8x128xf32>
    %95 = arith.mulf %83, %94 : vector<8x128xf32>
    %96 = arith.addf %92, %95 : vector<8x128xf32>
    %97 = vector.extract_strided_slice %74 {offsets = [0, 2], sizes = [8, 1], strides = [1, 1]} : vector<8x8xf32> to vector<8x1xf32>
    %98 = vector.broadcast %97 : vector<8x1xf32> to vector<8x128xf32>
    %99 = arith.mulf %89, %98 : vector<8x128xf32>
    %100 = arith.addf %96, %99 : vector<8x128xf32>
    %101 = vector.extract_strided_slice %74 {offsets = [0, 3], sizes = [8, 1], strides = [1, 1]} : vector<8x8xf32> to vector<8x1xf32>
    %102 = vector.broadcast %101 : vector<8x1xf32> to vector<8x128xf32>
    %103 = arith.addf %100, %102 : vector<8x128xf32>
    %cst_36 = arith.constant 0.000000e+00 : f32
    %104 = vector.broadcast %cst_36 : f32 to vector<8x128xf32>
    %105 = arith.maximumf %103, %104 : vector<8x128xf32>
    %c8_i32_37 = arith.constant 8 : i32
    %106 = tpu.dynamic_rotate %105 by %c8_i32_37 dim 1 : vector<8x128xf32>, i32 -> vector<8x128xf32>
    %107 = vector.broadcast %4 : vector<1x128xf32> to vector<8x128xf32>
    %108 = arith.mulf %106, %107 : vector<8x128xf32>
    %c120_i32_38 = arith.constant 120 : i32
    %109 = tpu.dynamic_rotate %105 by %c120_i32_38 dim 1 : vector<8x128xf32>, i32 -> vector<8x128xf32>
    %110 = vector.broadcast %5 : vector<1x128xf32> to vector<8x128xf32>
    %111 = arith.mulf %109, %110 : vector<8x128xf32>
    %112 = vector.extract_strided_slice %74 {offsets = [0, 4], sizes = [8, 1], strides = [1, 1]} : vector<8x8xf32> to vector<8x1xf32>
    %113 = vector.broadcast %112 : vector<8x1xf32> to vector<8x128xf32>
    %114 = arith.mulf %108, %113 : vector<8x128xf32>
    %115 = vector.extract_strided_slice %74 {offsets = [0, 5], sizes = [8, 1], strides = [1, 1]} : vector<8x8xf32> to vector<8x1xf32>
    %116 = vector.broadcast %115 : vector<8x1xf32> to vector<8x128xf32>
    %117 = arith.mulf %105, %116 : vector<8x128xf32>
    %118 = arith.addf %114, %117 : vector<8x128xf32>
    %119 = vector.extract_strided_slice %74 {offsets = [0, 6], sizes = [8, 1], strides = [1, 1]} : vector<8x8xf32> to vector<8x1xf32>
    %120 = vector.broadcast %119 : vector<8x1xf32> to vector<8x128xf32>
    %121 = arith.mulf %111, %120 : vector<8x128xf32>
    %122 = arith.addf %118, %121 : vector<8x128xf32>
    %123 = vector.extract_strided_slice %74 {offsets = [0, 7], sizes = [8, 1], strides = [1, 1]} : vector<8x8xf32> to vector<8x1xf32>
    %124 = vector.broadcast %123 : vector<8x1xf32> to vector<8x128xf32>
    %125 = arith.addf %122, %124 : vector<8x128xf32>
    %cst_39 = arith.constant 0.000000e+00 : f32
    %126 = vector.broadcast %cst_39 : f32 to vector<8x128xf32>
    %127 = arith.maximumf %125, %126 : vector<8x128xf32>
    %128 = tpu.concatenate %83, %127 in 0 : vector<8x128xf32>, vector<8x128xf32> -> vector<16x128xf32>
    %cst_40 = arith.constant dense<0.000000e+00> : vector<8x128xf32>
    %129 = tpu.matmul %75, %128, %cst_40 {dimension_numbers = #tpu.dot_dimension_numbers<[1], [0], [0], [1], [0, 0, 1, 1], [], []>} : vector<8x16xf32>, vector<16x128xf32>, vector<8x128xf32> -> vector<8x128xf32>
    %130 = vector.broadcast %76 : vector<8x1xf32> to vector<8x128xf32>
    %131 = arith.addf %129, %130 : vector<8x128xf32>
    %cst_41 = arith.constant 0.000000e+00 : f32
    %132 = vector.broadcast %cst_41 : f32 to vector<8x128xf32>
    %133 = arith.maximumf %131, %132 : vector<8x128xf32>
    %c0_42 = arith.constant 0 : index
    %c0_43 = arith.constant 0 : index
    %c0_44 = arith.constant 0 : index
    %134 = vector.load %arg14[%c0_42, %c0_43, %c0_44] : memref<1x8x128xf32, #tpu.memory_space<vmem>>, vector<1x8x128xf32>
    %135 = vector.shape_cast %134 : vector<1x8x128xf32> to vector<8x128xf32>
    %136 = vector.shape_cast %133 : vector<8x128xf32> to vector<1x8x128xf32>
    tpu.vector_store %arg14[%c0_42, %c0_43, %c0_44], %136 {strides = array<i32>} : memref<1x8x128xf32, #tpu.memory_space<vmem>>, vector<1x8x128xf32>,
    return
  }
  func.func @transform_0(%arg0: i32) -> (i32, i32, i32) {
    %c0_i32 = arith.constant 0 : i32
    %c0_i32_0 = arith.constant 0 : i32
    %c0_i32_1 = arith.constant 0 : i32
    return %arg0, %c0_i32, %c0_i32_0 : i32, i32, i32
  }
  func.func @transform_1(%arg0: i32) -> (i32, i32) {
    %c0_i32 = arith.constant 0 : i32
    %c0_i32_0 = arith.constant 0 : i32
    %c0_i32_1 = arith.constant 0 : i32
    return %c0_i32, %c0_i32_0 : i32, i32
  }
  func.func @transform_2(%arg0: i32) -> (i32, i32) {
    %c0_i32 = arith.constant 0 : i32
    %c0_i32_0 = arith.constant 0 : i32
    %c0_i32_1 = arith.constant 0 : i32
    return %c0_i32, %c0_i32_0 : i32, i32
  }
  func.func @transform_3(%arg0: i32) -> (i32, i32) {
    %c0_i32 = arith.constant 0 : i32
    %c0_i32_0 = arith.constant 0 : i32
    %c0_i32_1 = arith.constant 0 : i32
    return %c0_i32, %c0_i32_0 : i32, i32
  }
  func.func @transform_4(%arg0: i32) -> (i32, i32) {
    %c0_i32 = arith.constant 0 : i32
    %c0_i32_0 = arith.constant 0 : i32
    %c0_i32_1 = arith.constant 0 : i32
    return %c0_i32, %c0_i32_0 : i32, i32
  }
  func.func @transform_5(%arg0: i32) -> (i32, i32) {
    %c0_i32 = arith.constant 0 : i32
    %c0_i32_0 = arith.constant 0 : i32
    %c0_i32_1 = arith.constant 0 : i32
    return %c0_i32, %c0_i32_0 : i32, i32
  }
  func.func @transform_6(%arg0: i32) -> (i32, i32) {
    %c0_i32 = arith.constant 0 : i32
    %c0_i32_0 = arith.constant 0 : i32
    %c0_i32_1 = arith.constant 0 : i32
    return %c0_i32, %c0_i32_0 : i32, i32
  }
  func.func @transform_7(%arg0: i32) -> (i32, i32) {
    %c0_i32 = arith.constant 0 : i32
    %c0_i32_0 = arith.constant 0 : i32
    %c0_i32_1 = arith.constant 0 : i32
    return %c0_i32, %c0_i32_0 : i32, i32
  }
  func.func @transform_8(%arg0: i32) -> (i32, i32) {
    %c0_i32 = arith.constant 0 : i32
    %c0_i32_0 = arith.constant 0 : i32
    %c0_i32_1 = arith.constant 0 : i32
    return %c0_i32, %c0_i32_0 : i32, i32
  }
  func.func @transform_9(%arg0: i32) -> (i32, i32) {
    %c0_i32 = arith.constant 0 : i32
    %c0_i32_0 = arith.constant 0 : i32
    %c0_i32_1 = arith.constant 0 : i32
    return %c0_i32, %c0_i32_0 : i32, i32
  }
  func.func @transform_10(%arg0: i32) -> (i32, i32) {
    %c0_i32 = arith.constant 0 : i32
    %c0_i32_0 = arith.constant 0 : i32
    %c0_i32_1 = arith.constant 0 : i32
    return %c0_i32, %c0_i32_0 : i32, i32
  }
  func.func @transform_11(%arg0: i32) -> (i32, i32) {
    %c0_i32 = arith.constant 0 : i32
    %c0_i32_0 = arith.constant 0 : i32
    %c0_i32_1 = arith.constant 0 : i32
    return %c0_i32, %c0_i32_0 : i32, i32
  }
  func.func @transform_12(%arg0: i32) -> (i32, i32) {
    %c0_i32 = arith.constant 0 : i32
    %c0_i32_0 = arith.constant 0 : i32
    %c0_i32_1 = arith.constant 0 : i32
    return %c0_i32, %c0_i32_0 : i32, i32
  }
  func.func @transform_13(%arg0: i32) -> (i32, i32, i32) {
    %c0_i32 = arith.constant 0 : i32
    %c0_i32_0 = arith.constant 0 : i32
    %c0_i32_1 = arith.constant 0 : i32
    return %arg0, %c0_i32, %c0_i32_0 : i32, i32, i32
  }
}

module attributes {stable_mosaic.version = 11 : i64} {
  func.func @spark_down_kernel(%arg0: i32, %arg1: memref<1x4x256xf32, #tpu.memory_space<vmem>>, %arg2: memref<256x128xf32, #tpu.memory_space<vmem>>, %arg3: memref<5x128xf32, #tpu.memory_space<vmem>>, %arg4: memref<8x4xf32, #tpu.memory_space<vmem>>, %arg5: memref<8x1xf32, #tpu.memory_space<vmem>>, %arg6: memref<8x8xf32, #tpu.memory_space<vmem>>, %arg7: memref<8x16xf32, #tpu.memory_space<vmem>>, %arg8: memref<8x1xf32, #tpu.memory_space<vmem>>, %arg9: memref<8x8xf32, #tpu.memory_space<vmem>>, %arg10: memref<8x1xf32, #tpu.memory_space<vmem>>, %arg11: memref<8x8xf32, #tpu.memory_space<vmem>>, %arg12: memref<8x16xf32, #tpu.memory_space<vmem>>, %arg13: memref<8x1xf32, #tpu.memory_space<vmem>>, %arg14: memref<1x8x128xf32, #tpu.memory_space<vmem>>) attributes {dimension_semantics = [#tpu.dimension_semantics<parallel>], iteration_bounds = array<i64: 2>, scalar_prefetch = 0 : i64, scratch_operands = 0 : i64, tpu.core_type = #tpu.core_type<tc>, window_params = [{transform_indices = @transform_0, window_bounds = array<i64: 1, 4, 256>}, {pipeline_mode = #tpu.pipeline_mode<synchronous>, transform_indices = @transform_1, window_bounds = array<i64: 256, 128>}, {pipeline_mode = #tpu.pipeline_mode<synchronous>, transform_indices = @transform_2, window_bounds = array<i64: 5, 128>}, {pipeline_mode = #tpu.pipeline_mode<synchronous>, transform_indices = @transform_3, window_bounds = array<i64: 8, 4>}, {pipeline_mode = #tpu.pipeline_mode<synchronous>, transform_indices = @transform_4, window_bounds = array<i64: 8, 1>}, {pipeline_mode = #tpu.pipeline_mode<synchronous>, transform_indices = @transform_5, window_bounds = array<i64: 8, 8>}, {pipeline_mode = #tpu.pipeline_mode<synchronous>, transform_indices = @transform_6, window_bounds = array<i64: 8, 16>}, {pipeline_mode = #tpu.pipeline_mode<synchronous>, transform_indices = @transform_7, window_bounds = array<i64: 8, 1>}, {pipeline_mode = #tpu.pipeline_mode<synchronous>, transform_indices = @transform_8, window_bounds = array<i64: 8, 8>}, {pipeline_mode = #tpu.pipeline_mode<synchronous>, transform_indices = @transform_9, window_bounds = array<i64: 8, 1>}, {pipeline_mode = #tpu.pipeline_mode<synchronous>, transform_indices = @transform_10, window_bounds = array<i64: 8, 8>}, {pipeline_mode = #tpu.pipeline_mode<synchronous>, transform_indices = @transform_11, window_bounds = array<i64: 8, 16>}, {pipeline_mode = #tpu.pipeline_mode<synchronous>, transform_indices = @transform_12, window_bounds = array<i64: 8, 1>}, {transform_indices = @transform_13, window_bounds = array<i64: 1, 8, 128>}]} {
    %c0 = arith.constant 0 : index
    %c0_0 = arith.constant 0 : index
    %0 = vector.load %arg3[%c0, %c0_0] : memref<5x128xf32, #tpu.memory_space<vmem>>, vector<5x128xf32>
    %1 = vector.extract_strided_slice %0 {offsets = [0, 0], sizes = [1, 128], strides = [1, 1]} : vector<5x128xf32> to vector<1x128xf32>
    %2 = vector.extract_strided_slice %0 {offsets = [1, 0], sizes = [1, 128], strides = [1, 1]} : vector<5x128xf32> to vector<1x128xf32>
    %3 = vector.extract_strided_slice %0 {offsets = [2, 0], sizes = [1, 128], strides = [1, 1]} : vector<5x128xf32> to vector<1x128xf32>
    %4 = vector.extract_strided_slice %0 {offsets = [3, 0], sizes = [1, 128], strides = [1, 1]} : vector<5x128xf32> to vector<1x128xf32>
    %5 = vector.extract_strided_slice %0 {offsets = [4, 0], sizes = [1, 128], strides = [1, 1]} : vector<5x128xf32> to vector<1x128xf32>
    %c0_1 = arith.constant 0 : index
    %c0_2 = arith.constant 0 : index
    %c0_3 = arith.constant 0 : index
    %6 = vector.load %arg1[%c0_1, %c0_2, %c0_3] : memref<1x4x256xf32, #tpu.memory_space<vmem>>, vector<1x4x256xf32>
    %7 = vector.shape_cast %6 : vector<1x4x256xf32> to vector<4x256xf32>
    %c0_4 = arith.constant 0 : index
    %c0_5 = arith.constant 0 : index
    %8 = vector.load %arg2[%c0_4, %c0_5] : memref<256x128xf32, #tpu.memory_space<vmem>>, vector<256x128xf32>
    %cst = arith.constant dense<0.000000e+00> : vector<4x128xf32>
    %9 = tpu.matmul %7, %8, %cst {dimension_numbers = #tpu.dot_dimension_numbers<[1], [0], [0], [1], [0, 0, 1, 1], [], []>} : vector<4x256xf32>, vector<256x128xf32>, vector<4x128xf32> -> vector<4x128xf32>
    %c0_6 = arith.constant 0 : index
    %c0_7 = arith.constant 0 : index
    %10 = vector.load %arg4[%c0_6, %c0_7] : memref<8x4xf32, #tpu.memory_space<vmem>>, vector<8x4xf32>
    %c0_8 = arith.constant 0 : index
    %c0_9 = arith.constant 0 : index
    %11 = vector.load %arg5[%c0_8, %c0_9] : memref<8x1xf32, #tpu.memory_space<vmem>>, vector<8x1xf32>
    %c0_10 = arith.constant 0 : index
    %c0_11 = arith.constant 0 : index
    %12 = vector.load %arg6[%c0_10, %c0_11] : memref<8x8xf32, #tpu.memory_space<vmem>>, vector<8x8xf32>
    %c0_12 = arith.constant 0 : index
    %c0_13 = arith.constant 0 : index
    %13 = vector.load %arg7[%c0_12, %c0_13] : memref<8x16xf32, #tpu.memory_space<vmem>>, vector<8x16xf32>
    %c0_14 = arith.constant 0 : index
    %c0_15 = arith.constant 0 : index
    %14 = vector.load %arg8[%c0_14, %c0_15] : memref<8x1xf32, #tpu.memory_space<vmem>>, vector<8x1xf32>
    %cst_16 = arith.constant dense<0.000000e+00> : vector<8x128xf32>
    %15 = tpu.matmul %10, %9, %cst_16 {dimension_numbers = #tpu.dot_dimension_numbers<[1], [0], [0], [1], [0, 0, 1, 1], [], []>} : vector<8x4xf32>, vector<4x128xf32>, vector<8x128xf32> -> vector<8x128xf32>
    %16 = vector.broadcast %11 : vector<8x1xf32> to vector<8x128xf32>
    %17 = arith.addf %15, %16 : vector<8x128xf32>
    %cst_17 = arith.constant 0.000000e+00 : f32
    %18 = vector.broadcast %cst_17 : f32 to vector<8x128xf32>
    %19 = arith.maximumf %17, %18 : vector<8x128xf32>
    %20 = vector.broadcast %1 : vector<1x128xf32> to vector<8x128xf32>
    %21 = arith.mulf %19, %20 : vector<8x128xf32>
    %c1_i32 = arith.constant 1 : i32
    %22 = tpu.dynamic_rotate %21 by %c1_i32 dim 1 : vector<8x128xf32>, i32 -> vector<8x128xf32>
    %23 = vector.broadcast %2 : vector<1x128xf32> to vector<8x128xf32>
    %24 = arith.mulf %22, %23 : vector<8x128xf32>
    %c127_i32 = arith.constant 127 : i32
    %25 = tpu.dynamic_rotate %21 by %c127_i32 dim 1 : vector<8x128xf32>, i32 -> vector<8x128xf32>
    %26 = vector.broadcast %3 : vector<1x128xf32> to vector<8x128xf32>
    %27 = arith.mulf %25, %26 : vector<8x128xf32>
    %28 = vector.extract_strided_slice %12 {offsets = [0, 0], sizes = [8, 1], strides = [1, 1]} : vector<8x8xf32> to vector<8x1xf32>
    %29 = vector.broadcast %28 : vector<8x1xf32> to vector<8x128xf32>
    %30 = arith.mulf %24, %29 : vector<8x128xf32>
    %31 = vector.extract_strided_slice %12 {offsets = [0, 1], sizes = [8, 1], strides = [1, 1]} : vector<8x8xf32> to vector<8x1xf32>
    %32 = vector.broadcast %31 : vector<8x1xf32> to vector<8x128xf32>
    %33 = arith.mulf %21, %32 : vector<8x128xf32>
    %34 = arith.addf %30, %33 : vector<8x128xf32>
    %35 = vector.extract_strided_slice %12 {offsets = [0, 2], sizes = [8, 1], strides = [1, 1]} : vector<8x8xf32> to vector<8x1xf32>
    %36 = vector.broadcast %35 : vector<8x1xf32> to vector<8x128xf32>
    %37 = arith.mulf %27, %36 : vector<8x128xf32>
    %38 = arith.addf %34, %37 : vector<8x128xf32>
    %39 = vector.extract_strided_slice %12 {offsets = [0, 3], sizes = [8, 1], strides = [1, 1]} : vector<8x8xf32> to vector<8x1xf32>
    %40 = vector.broadcast %39 : vector<8x1xf32> to vector<8x128xf32>
    %41 = arith.addf %38, %40 : vector<8x128xf32>
    %cst_18 = arith.constant 0.000000e+00 : f32
    %42 = vector.broadcast %cst_18 : f32 to vector<8x128xf32>
    %43 = arith.maximumf %41, %42 : vector<8x128xf32>
    %c8_i32 = arith.constant 8 : i32
    %44 = tpu.dynamic_rotate %43 by %c8_i32 dim 1 : vector<8x128xf32>, i32 -> vector<8x128xf32>
    %45 = vector.broadcast %4 : vector<1x128xf32> to vector<8x128xf32>
    %46 = arith.mulf %44, %45 : vector<8x128xf32>
    %c120_i32 = arith.constant 120 : i32
    %47 = tpu.dynamic_rotate %43 by %c120_i32 dim 1 : vector<8x128xf32>, i32 -> vector<8x128xf32>
    %48 = vector.broadcast %5 : vector<1x128xf32> to vector<8x128xf32>
    %49 = arith.mulf %47, %48 : vector<8x128xf32>
    %50 = vector.extract_strided_slice %12 {offsets = [0, 4], sizes = [8, 1], strides = [1, 1]} : vector<8x8xf32> to vector<8x1xf32>
    %51 = vector.broadcast %50 : vector<8x1xf32> to vector<8x128xf32>
    %52 = arith.mulf %46, %51 : vector<8x128xf32>
    %53 = vector.extract_strided_slice %12 {offsets = [0, 5], sizes = [8, 1], strides = [1, 1]} : vector<8x8xf32> to vector<8x1xf32>
    %54 = vector.broadcast %53 : vector<8x1xf32> to vector<8x128xf32>
    %55 = arith.mulf %43, %54 : vector<8x128xf32>
    %56 = arith.addf %52, %55 : vector<8x128xf32>
    %57 = vector.extract_strided_slice %12 {offsets = [0, 6], sizes = [8, 1], strides = [1, 1]} : vector<8x8xf32> to vector<8x1xf32>
    %58 = vector.broadcast %57 : vector<8x1xf32> to vector<8x128xf32>
    %59 = arith.mulf %49, %58 : vector<8x128xf32>
    %60 = arith.addf %56, %59 : vector<8x128xf32>
    %61 = vector.extract_strided_slice %12 {offsets = [0, 7], sizes = [8, 1], strides = [1, 1]} : vector<8x8xf32> to vector<8x1xf32>
    %62 = vector.broadcast %61 : vector<8x1xf32> to vector<8x128xf32>
    %63 = arith.addf %60, %62 : vector<8x128xf32>
    %cst_19 = arith.constant 0.000000e+00 : f32
    %64 = vector.broadcast %cst_19 : f32 to vector<8x128xf32>
    %65 = arith.maximumf %63, %64 : vector<8x128xf32>
    %66 = tpu.concatenate %21, %65 in 0 : vector<8x128xf32>, vector<8x128xf32> -> vector<16x128xf32>
    %cst_20 = arith.constant dense<0.000000e+00> : vector<8x128xf32>
    %67 = tpu.matmul %13, %66, %cst_20 {dimension_numbers = #tpu.dot_dimension_numbers<[1], [0], [0], [1], [0, 0, 1, 1], [], []>} : vector<8x16xf32>, vector<16x128xf32>, vector<8x128xf32> -> vector<8x128xf32>
    %68 = vector.broadcast %14 : vector<8x1xf32> to vector<8x128xf32>
    %69 = arith.addf %67, %68 : vector<8x128xf32>
    %cst_21 = arith.constant 0.000000e+00 : f32
    %70 = vector.broadcast %cst_21 : f32 to vector<8x128xf32>
    %71 = arith.maximumf %69, %70 : vector<8x128xf32>
    %c0_22 = arith.constant 0 : index
    %c0_23 = arith.constant 0 : index
    %72 = vector.load %arg9[%c0_22, %c0_23] : memref<8x8xf32, #tpu.memory_space<vmem>>, vector<8x8xf32>
    %c0_24 = arith.constant 0 : index
    %c0_25 = arith.constant 0 : index
    %73 = vector.load %arg10[%c0_24, %c0_25] : memref<8x1xf32, #tpu.memory_space<vmem>>, vector<8x1xf32>
    %c0_26 = arith.constant 0 : index
    %c0_27 = arith.constant 0 : index
    %74 = vector.load %arg11[%c0_26, %c0_27] : memref<8x8xf32, #tpu.memory_space<vmem>>, vector<8x8xf32>
    %c0_28 = arith.constant 0 : index
    %c0_29 = arith.constant 0 : index
    %75 = vector.load %arg12[%c0_28, %c0_29] : memref<8x16xf32, #tpu.memory_space<vmem>>, vector<8x16xf32>
    %c0_30 = arith.constant 0 : index
    %c0_31 = arith.constant 0 : index
    %76 = vector.load %arg13[%c0_30, %c0_31] : memref<8x1xf32, #tpu.memory_space<vmem>>, vector<8x1xf32>
    %cst_32 = arith.constant dense<0.000000e+00> : vector<8x128xf32>
    %77 = tpu.matmul %72, %71, %cst_32 {dimension_numbers = #tpu.dot_dimension_numbers<[1], [0], [0], [1], [0, 0, 1, 1], [], []>} : vector<8x8xf32>, vector<8x128xf32>, vector<8x128xf32> -> vector<8x128xf32>
    %78 = vector.broadcast %73 : vector<8x1xf32> to vector<8x128xf32>
    %79 = arith.addf %77, %78 : vector<8x128xf32>
    %cst_33 = arith.constant 0.000000e+00 : f32
    %80 = vector.broadcast %cst_33 : f32 to vector<8x128xf32>
    %81 = arith.maximumf %79, %80 : vector<8x128xf32>
    %82 = vector.broadcast %1 : vector<1x128xf32> to vector<8x128xf32>
    %83 = arith.mulf %81, %82 : vector<8x128xf32>
    %c1_i32_34 = arith.constant 1 : i32
    %84 = tpu.dynamic_rotate %83 by %c1_i32_34 dim 1 : vector<8x128xf32>, i32 -> vector<8x128xf32>
    %85 = vector.broadcast %2 : vector<1x128xf32> to vector<8x128xf32>
    %86 = arith.mulf %84, %85 : vector<8x128xf32>
    %c127_i32_35 = arith.constant 127 : i32
    %87 = tpu.dynamic_rotate %83 by %c127_i32_35 dim 1 : vector<8x128xf32>, i32 -> vector<8x128xf32>
    %88 = vector.broadcast %3 : vector<1x128xf32> to vector<8x128xf32>
    %89 = arith.mulf %87, %88 : vector<8x128xf32>
    %90 = vector.extract_strided_slice %74 {offsets = [0, 0], sizes = [8, 1], strides = [1, 1]} : vector<8x8xf32> to vector<8x1xf32>
    %91 = vector.broadcast %90 : vector<8x1xf32> to vector<8x128xf32>
    %92 = arith.mulf %86, %91 : vector<8x128xf32>
    %93 = vector.extract_strided_slice %74 {offsets = [0, 1], sizes = [8, 1], strides = [1, 1]} : vector<8x8xf32> to vector<8x1xf32>
    %94 = vector.broadcast %93 : vector<8x1xf32> to vector<8x128xf32>
    %95 = arith.mulf %83, %94 : vector<8x128xf32>
    %96 = arith.addf %92, %95 : vector<8x128xf32>
    %97 = vector.extract_strided_slice %74 {offsets = [0, 2], sizes = [8, 1], strides = [1, 1]} : vector<8x8xf32> to vector<8x1xf32>
    %98 = vector.broadcast %97 : vector<8x1xf32> to vector<8x128xf32>
    %99 = arith.mulf %89, %98 : vector<8x128xf32>
    %100 = arith.addf %96, %99 : vector<8x128xf32>
    %101 = vector.extract_strided_slice %74 {offsets = [0, 3], sizes = [8, 1], strides = [1, 1]} : vector<8x8xf32> to vector<8x1xf32>
    %102 = vector.broadcast %101 : vector<8x1xf32> to vector<8x128xf32>
    %103 = arith.addf %100, %102 : vector<8x128xf32>
    %cst_36 = arith.constant 0.000000e+00 : f32
    %104 = vector.broadcast %cst_36 : f32 to vector<8x128xf32>
    %105 = arith.maximumf %103, %104 : vector<8x128xf32>
    %c8_i32_37 = arith.constant 8 : i32
    %106 = tpu.dynamic_rotate %105 by %c8_i32_37 dim 1 : vector<8x128xf32>, i32 -> vector<8x128xf32>
    %107 = vector.broadcast %4 : vector<1x128xf32> to vector<8x128xf32>
    %108 = arith.mulf %106, %107 : vector<8x128xf32>
    %c120_i32_38 = arith.constant 120 : i32
    %109 = tpu.dynamic_rotate %105 by %c120_i32_38 dim 1 : vector<8x128xf32>, i32 -> vector<8x128xf32>
    %110 = vector.broadcast %5 : vector<1x128xf32> to vector<8x128xf32>
    %111 = arith.mulf %109, %110 : vector<8x128xf32>
    %112 = vector.extract_strided_slice %74 {offsets = [0, 4], sizes = [8, 1], strides = [1, 1]} : vector<8x8xf32> to vector<8x1xf32>
    %113 = vector.broadcast %112 : vector<8x1xf32> to vector<8x128xf32>
    %114 = arith.mulf %108, %113 : vector<8x128xf32>
    %115 = vector.extract_strided_slice %74 {offsets = [0, 5], sizes = [8, 1], strides = [1, 1]} : vector<8x8xf32> to vector<8x1xf32>
    %116 = vector.broadcast %115 : vector<8x1xf32> to vector<8x128xf32>
    %117 = arith.mulf %105, %116 : vector<8x128xf32>
    %118 = arith.addf %114, %117 : vector<8x128xf32>
    %119 = vector.extract_strided_slice %74 {offsets = [0, 6], sizes = [8, 1], strides = [1, 1]} : vector<8x8xf32> to vector<8x1xf32>
    %120 = vector.broadcast %119 : vector<8x1xf32> to vector<8x128xf32>
    %121 = arith.mulf %111, %120 : vector<8x128xf32>
    %122 = arith.addf %118, %121 : vector<8x128xf32>
    %123 = vector.extract_strided_slice %74 {offsets = [0, 7], sizes = [8, 1], strides = [1, 1]} : vector<8x8xf32> to vector<8x1xf32>
    %124 = vector.broadcast %123 : vector<8x1xf32> to vector<8x128xf32>
    %125 = arith.addf %122, %124 : vector<8x128xf32>
    %cst_39 = arith.constant 0.000000e+00 : f32
    %126 = vector.broadcast %cst_39 : f32 to vector<8x128xf32>
    %127 = arith.maximumf %125, %126 : vector<8x128xf32>
    %128 = tpu.concatenate %83, %127 in 0 : vector<8x128xf32>, vector<8x128xf32> -> vector<16x128xf32>
    %cst_40 = arith.constant dense<0.000000e+00> : vector<8x128xf32>
    %129 = tpu.matmul %75, %128, %cst_40 {dimension_numbers = #tpu.dot_dimension_numbers<[1], [0], [0], [1], [0, 0, 1, 1], [], []>} : vector<8x16xf32>, vector<16x128xf32>, vector<8x128xf32> -> vector<8x128xf32>
    %130 = vector.broadcast %76 : vector<8x1xf32> to vector<8x128xf32>
    %131 = arith.addf %129, %130 : vector<8x128xf32>
    %cst_41 = arith.constant 0.000000e+00 : f32
    %132 = vector.broadcast %cst_41 : f32 to vector<8x128xf32>
    %133 = arith.maximumf %131, %132 : vector<8x128xf32>
    %c0_42 = arith.constant 0 : index
    %c0_43 = arith.constant 0 : index
    %c0_44 = arith.constant 0 : index
    %134 = vector.load %arg14[%c0_42, %c0_43, %c0_44] : memref<1x8x128xf32, #tpu.memory_space<vmem>>, vector<1x8x128xf32>
    %135 = vector.shape_cast %134 : vector<1x8x128xf32> to vector<8x128xf32>
    %136 = vector.shape_cast %133 : vector<8x128xf32> to vector<1x8x128xf32>
    tpu.vector_store %arg14[%c0_42, %c0_43, %c0_44], %136 {strides = array<i32>} : memref<1x8x128xf32, #tpu.memory_space<vmem>>, vector<1x8x128xf32>,
    return
  }
  func.func @transform_0(%arg0: i32) -> (i32, i32, i32) {
    %c0_i32 = arith.constant 0 : i32
    %c0_i32_0 = arith.constant 0 : i32
    %c0_i32_1 = arith.constant 0 : i32
    return %arg0, %c0_i32, %c0_i32_0 : i32, i32, i32
  }
  func.func @transform_1(%arg0: i32) -> (i32, i32) {
    %c0_i32 = arith.constant 0 : i32
    %c0_i32_0 = arith.constant 0 : i32
    %c0_i32_1 = arith.constant 0 : i32
    return %c0_i32, %c0_i32_0 : i32, i32
  }
  func.func @transform_2(%arg0: i32) -> (i32, i32) {
    %c0_i32 = arith.constant 0 : i32
    %c0_i32_0 = arith.constant 0 : i32
    %c0_i32_1 = arith.constant 0 : i32
    return %c0_i32, %c0_i32_0 : i32, i32
  }
  func.func @transform_3(%arg0: i32) -> (i32, i32) {
    %c0_i32 = arith.constant 0 : i32
    %c0_i32_0 = arith.constant 0 : i32
    %c0_i32_1 = arith.constant 0 : i32
    return %c0_i32, %c0_i32_0 : i32, i32
  }
  func.func @transform_4(%arg0: i32) -> (i32, i32) {
    %c0_i32 = arith.constant 0 : i32
    %c0_i32_0 = arith.constant 0 : i32
    %c0_i32_1 = arith.constant 0 : i32
    return %c0_i32, %c0_i32_0 : i32, i32
  }
  func.func @transform_5(%arg0: i32) -> (i32, i32) {
    %c0_i32 = arith.constant 0 : i32
    %c0_i32_0 = arith.constant 0 : i32
    %c0_i32_1 = arith.constant 0 : i32
    return %c0_i32, %c0_i32_0 : i32, i32
  }
  func.func @transform_6(%arg0: i32) -> (i32, i32) {
    %c0_i32 = arith.constant 0 : i32
    %c0_i32_0 = arith.constant 0 : i32
    %c0_i32_1 = arith.constant 0 : i32
    return %c0_i32, %c0_i32_0 : i32, i32
  }
  func.func @transform_7(%arg0: i32) -> (i32, i32) {
    %c0_i32 = arith.constant 0 : i32
    %c0_i32_0 = arith.constant 0 : i32
    %c0_i32_1 = arith.constant 0 : i32
    return %c0_i32, %c0_i32_0 : i32, i32
  }
  func.func @transform_8(%arg0: i32) -> (i32, i32) {
    %c0_i32 = arith.constant 0 : i32
    %c0_i32_0 = arith.constant 0 : i32
    %c0_i32_1 = arith.constant 0 : i32
    return %c0_i32, %c0_i32_0 : i32, i32
  }
  func.func @transform_9(%arg0: i32) -> (i32, i32) {
    %c0_i32 = arith.constant 0 : i32
    %c0_i32_0 = arith.constant 0 : i32
    %c0_i32_1 = arith.constant 0 : i32
    return %c0_i32, %c0_i32_0 : i32, i32
  }
  func.func @transform_10(%arg0: i32) -> (i32, i32) {
    %c0_i32 = arith.constant 0 : i32
    %c0_i32_0 = arith.constant 0 : i32
    %c0_i32_1 = arith.constant 0 : i32
    return %c0_i32, %c0_i32_0 : i32, i32
  }
  func.func @transform_11(%arg0: i32) -> (i32, i32) {
    %c0_i32 = arith.constant 0 : i32
    %c0_i32_0 = arith.constant 0 : i32
    %c0_i32_1 = arith.constant 0 : i32
    return %c0_i32, %c0_i32_0 : i32, i32
  }
  func.func @transform_12(%arg0: i32) -> (i32, i32) {
    %c0_i32 = arith.constant 0 : i32
    %c0_i32_0 = arith.constant 0 : i32
    %c0_i32_1 = arith.constant 0 : i32
    return %c0_i32, %c0_i32_0 : i32, i32
  }
  func.func @transform_13(%arg0: i32) -> (i32, i32, i32) {
    %c0_i32 = arith.constant 0 : i32
    %c0_i32_0 = arith.constant 0 : i32
    %c0_i32_1 = arith.constant 0 : i32
    return %arg0, %c0_i32, %c0_i32_0 : i32, i32, i32
  }
}

</mosaic_0001>

<llo_original>
// kernel: tpu_custom_call.1
$region0: #{tpu_custom_call.1}
  #allocation0 [shape = 'u32[]', space=smem, size = 0x4, offset = 0x4, fixed_abs, tag = 'smem constant byte address 0x4 - core index']
  #allocation1 [shape = 'u32[72,128]{1,0:T(1,128)}', space=vmem, size = 0x9000, scoped, tag = 'internal scratch']
  %s0 = inlined_call_operand.vmem [shape: f32[2,4,256], index: 0, kind: input, shape index: {}]
  %s1 = inlined_call_operand.hbm [shape: f32[256,128], index: 1, kind: input, shape index: {}]
  %s2 = inlined_call_operand.vmem [shape: f32[5,128], index: 2, kind: input, shape index: {}]
  %s3 = inlined_call_operand.vmem [shape: f32[8,4], index: 3, kind: input, shape index: {}]
  %s4 = inlined_call_operand.vmem [shape: f32[8,1], index: 4, kind: input, shape index: {}]
  %s5 = inlined_call_operand.vmem [shape: f32[8,8], index: 5, kind: input, shape index: {}]
  %s6 = inlined_call_operand.vmem [shape: f32[8,16], index: 6, kind: input, shape index: {}]
  %s7 = inlined_call_operand.vmem [shape: f32[8,1], index: 7, kind: input, shape index: {}]
  %s8 = inlined_call_operand.vmem [shape: f32[8,8], index: 8, kind: input, shape index: {}]
  %s9 = inlined_call_operand.vmem [shape: f32[8,1], index: 9, kind: input, shape index: {}]
  %s10 = inlined_call_operand.hbm [shape: f32[8,8], index: 10, kind: input, shape index: {}]
  %s11 = inlined_call_operand.hbm [shape: f32[8,16], index: 11, kind: input, shape index: {}]
  %s12 = inlined_call_operand.vmem [shape: f32[8,1], index: 12, kind: input, shape index: {}]
  %s13 = inlined_call_operand.hbm [shape: f32[2,8,128], index: 13, kind: output, shape index: {}]
  %s14 = sld [smem:[#allocation0]]
  $region97: #{tpu_custom_call.1} parent=0
    _
  %s16 = ssub.s32 1, %s14
  %s17 = scalar_select 0, %s16, %s14
  $region1: #{tpu_custom_call.1} parent=0
    #allocation2 [shape = 'u8[131072]{0}', space=vmem, size = 0x20000, scoped, tag = 'input window, operand 1, single buffered']
    #allocation3 [shape = 's32[2]{0}', space=sflag, size = 0x8, scoped, tag = 'scoped memory for tpu_custom_call.1']
    #allocation4 [shape = 's32[2]{0}', space=sflag, size = 0x8, scoped, tag = 'scoped memory for tpu_custom_call.1']
    #allocation5 [shape = 'u8[4096]{0}', space=vmem, size = 0x1000, scoped, tag = 'input window, operand 10, single buffered']
    #allocation6 [shape = 's32[1]{0}', space=sflag, size = 0x4, scoped, tag = 'scoped memory for tpu_custom_call.1']
    #allocation7 [shape = 'u8[4096]{0}', space=vmem, size = 0x1000, scoped, tag = 'input window, operand 11, single buffered']
    #allocation8 [shape = 'u8[8192]{0}', space=vmem, size = 0x2000, scoped, tag = 'output window, operand 0']
    %18 = vsyncpa [#allocation3], 0
    %19 = vsyncpa [#allocation6], 0
    %20 = vsyncpa [#allocation4], 0
    %s21 = scalar_lea.sflag [#allocation4], 1
    %22 = vsyncpa %s21, 0
    loop: start=0, step=1, limit=4
    $region2: #{tpu_custom_call.1} parent=1 // loop_pre_header
      _
    $region3: #{tpu_custom_call.1} parent=1 // loop_header
      %s24 = sphi 0, %s28
      %p25 = scmp.ge.s32.totalorder %s24, 4
      %s34 = sphi 0, %s36
      %s37 = sphi 0, %s34
      %s38 = sphi 0, %s37
      %s54 = sphi 0, %s38
      %s58 = sphi 0, %s58
      %s60 = sphi 0, %s58
      %s61 = sphi 0, %s60
      %s75 = sphi 0, %s61
      %s79 = sphi 0, %s79
      %s81 = sphi 0, %s79
      %s82 = sphi 0, %s81
      %s96 = sphi 0, %s82
      %s100 = sphi 0, %s100
      %s102 = sphi 0, %s100
      %s103 = sphi 0, %s102
      %s117 = sphi 0, %s103
      %s121 = sphi 0, %s121
      %s123 = sphi 0, %s121
      %s124 = sphi 0, %s123
      %s138 = sphi 0, %s124
      %s142 = sphi 0, %s142
      %s144 = sphi 0, %s142
      %s145 = sphi 0, %s144
      %s159 = sphi 0, %s145
      %s163 = sphi 0, %s163
      %s165 = sphi 0, %s163
      %s166 = sphi 0, %s165
      %s180 = sphi 0, %s166
      %s184 = sphi 0, %s184
      %s186 = sphi 0, %s184
      %s187 = sphi 0, %s186
      %s201 = sphi 0, %s187
      %s205 = sphi 0, %s205
      %s207 = sphi 0, %s205
      %s208 = sphi 0, %s207
      %s222 = sphi 0, %s208
      %s226 = sphi 0, %s226
      %s228 = sphi 0, %s226
      %s229 = sphi 0, %s228
      %s243 = sphi 0, %s229
      %s247 = sphi 0, %s247
      %s249 = sphi 0, %s247
      %s250 = sphi 0, %s249
      %s264 = sphi 0, %s250
      %s268 = sphi 0, %s268
      %s270 = sphi 0, %s268
      %s271 = sphi 0, %s270
      %s285 = sphi 0, %s271
      %s289 = sphi 0, %s289
      %s291 = sphi 0, %s289
      %s292 = sphi 0, %s291
      %s306 = sphi 0, %s292
      %s312 = sphi 0, %s314
      %s315 = sphi 0, %s312
      %s316 = sphi 0, %s315
      %s332 = sphi 0, %s316
    $region4: #{tpu_custom_call.1} parent=1 // loop_header_branch
      %27 = sbr.rel (%p25) target = $region8
    $region5: #{tpu_custom_call.1} parent=1 // loop_body
      %s29 = ssub.s32 %s24, 1
      %s30 = ssub.s32 %s24, 2
      %s31 = sadd.s32 %s24, 1
      %s32 = ssub.s32 %s24, %s31
      %p33 = scmp.eq.s32.totalorder %s32, 0
      %s35 = sadd.s32 %s34, 1
      %s36 = scalar_select %p33, %s34, %s35
      %p39 = pneg %p33
      %p40 = scmp.eq.s32.totalorder %s24, 1
      %p41 = por %p39, %p40
      %p42 = scmp.ne.s32.totalorder %s34, %s37
      %p43 = scmp.eq.s32.totalorder %s24, 0
      %p44 = por %p42, %p43
      %p45 = scmp.ne.s32.totalorder %s34, %s37
      %p46 = scmp.eq.s32.totalorder %s29, 1
      %p47 = por %p45, %p46
      %p48 = scmp.ne.s32.totalorder %s37, %s38
      %p49 = scmp.eq.s32.totalorder %s29, 0
      %p50 = por %p48, %p49
      %p51 = scmp.ne.s32.totalorder %s37, %s38
      %p52 = scmp.eq.s32.totalorder %s30, 1
      %p53 = por %p51, %p52
      %p55 = scmp.ne.s32.totalorder %s38, %s54
      %p56 = scmp.eq.s32.totalorder %s30, 0
      %p57 = por %p55, %p56
      %s59 = sadd.s32 %s58, 1
      %p62 = scmp.eq.s32.totalorder %s24, 1
      %p63 = scmp.ne.s32.totalorder %s58, %s60
      %p64 = scmp.eq.s32.totalorder %s24, 0
      %p65 = por %p63, %p64
      %p66 = scmp.ne.s32.totalorder %s58, %s60
      %p67 = scmp.eq.s32.totalorder %s29, 1
      %p68 = por %p66, %p67
      %p69 = scmp.ne.s32.totalorder %s60, %s61
      %p70 = scmp.eq.s32.totalorder %s29, 0
      %p71 = por %p69, %p70
      %p72 = scmp.ne.s32.totalorder %s60, %s61
      %p73 = scmp.eq.s32.totalorder %s30, 1
      %p74 = por %p72, %p73
      %p76 = scmp.ne.s32.totalorder %s61, %s75
      %p77 = scmp.eq.s32.totalorder %s30, 0
      %p78 = por %p76, %p77
      %s80 = sadd.s32 %s79, 1
      %p83 = scmp.eq.s32.totalorder %s24, 1
      %p84 = scmp.ne.s32.totalorder %s79, %s81
      %p85 = scmp.eq.s32.totalorder %s24, 0
      %p86 = por %p84, %p85
      %p87 = scmp.ne.s32.totalorder %s79, %s81
      %p88 = scmp.eq.s32.totalorder %s29, 1
      %p89 = por %p87, %p88
      %p90 = scmp.ne.s32.totalorder %s81, %s82
      %p91 = scmp.eq.s32.totalorder %s29, 0
      %p92 = por %p90, %p91
      %p93 = scmp.ne.s32.totalorder %s81, %s82
      %p94 = scmp.eq.s32.totalorder %s30, 1
      %p95 = por %p93, %p94
      %p97 = scmp.ne.s32.totalorder %s82, %s96
      %p98 = scmp.eq.s32.totalorder %s30, 0
      %p99 = por %p97, %p98
      %s101 = sadd.s32 %s100, 1
      %p104 = scmp.eq.s32.totalorder %s24, 1
      %p105 = scmp.ne.s32.totalorder %s100, %s102
      %p106 = scmp.eq.s32.totalorder %s24, 0
      %p107 = por %p105, %p106
      %p108 = scmp.ne.s32.totalorder %s100, %s102
      %p109 = scmp.eq.s32.totalorder %s29, 1
      %p110 = por %p108, %p109
      %p111 = scmp.ne.s32.totalorder %s102, %s103
      %p112 = scmp.eq.s32.totalorder %s29, 0
      %p113 = por %p111, %p112
      %p114 = scmp.ne.s32.totalorder %s102, %s103
      %p115 = scmp.eq.s32.totalorder %s30, 1
      %p116 = por %p114, %p115
      %p118 = scmp.ne.s32.totalorder %s103, %s117
      %p119 = scmp.eq.s32.totalorder %s30, 0
      %p120 = por %p118, %p119
      %s122 = sadd.s32 %s121, 1
      %p125 = scmp.eq.s32.totalorder %s24, 1
      %p126 = scmp.ne.s32.totalorder %s121, %s123
      %p127 = scmp.eq.s32.totalorder %s24, 0
      %p128 = por %p126, %p127
      %p129 = scmp.ne.s32.totalorder %s121, %s123
      %p130 = scmp.eq.s32.totalorder %s29, 1
      %p131 = por %p129, %p130
      %p132 = scmp.ne.s32.totalorder %s123, %s124
      %p133 = scmp.eq.s32.totalorder %s29, 0
      %p134 = por %p132, %p133
      %p135 = scmp.ne.s32.totalorder %s123, %s124
      %p136 = scmp.eq.s32.totalorder %s30, 1
      %p137 = por %p135, %p136
      %p139 = scmp.ne.s32.totalorder %s124, %s138
      %p140 = scmp.eq.s32.totalorder %s30, 0
      %p141 = por %p139, %p140
      %s143 = sadd.s32 %s142, 1
      %p146 = scmp.eq.s32.totalorder %s24, 1
      %p147 = scmp.ne.s32.totalorder %s142, %s144
      %p148 = scmp.eq.s32.totalorder %s24, 0
      %p149 = por %p147, %p148
      %p150 = scmp.ne.s32.totalorder %s142, %s144
      %p151 = scmp.eq.s32.totalorder %s29, 1
      %p152 = por %p150, %p151
      %p153 = scmp.ne.s32.totalorder %s144, %s145
      %p154 = scmp.eq.s32.totalorder %s29, 0
      %p155 = por %p153, %p154
      %p156 = scmp.ne.s32.totalorder %s144, %s145
      %p157 = scmp.eq.s32.totalorder %s30, 1
      %p158 = por %p156, %p157
      %p160 = scmp.ne.s32.totalorder %s145, %s159
      %p161 = scmp.eq.s32.totalorder %s30, 0
      %p162 = por %p160, %p161
      %s164 = sadd.s32 %s163, 1
      %p167 = scmp.eq.s32.totalorder %s24, 1
      %p168 = scmp.ne.s32.totalorder %s163, %s165
      %p169 = scmp.eq.s32.totalorder %s24, 0
      %p170 = por %p168, %p169
      %p171 = scmp.ne.s32.totalorder %s163, %s165
      %p172 = scmp.eq.s32.totalorder %s29, 1
      %p173 = por %p171, %p172
      %p174 = scmp.ne.s32.totalorder %s165, %s166
      %p175 = scmp.eq.s32.totalorder %s29, 0
      %p176 = por %p174, %p175
      %p177 = scmp.ne.s32.totalorder %s165, %s166
      %p178 = scmp.eq.s32.totalorder %s30, 1
      %p179 = por %p177, %p178
      %p181 = scmp.ne.s32.totalorder %s166, %s180
      %p182 = scmp.eq.s32.totalorder %s30, 0
      %p183 = por %p181, %p182
      %s185 = sadd.s32 %s184, 1
      %p188 = scmp.eq.s32.totalorder %s24, 1
      %p189 = scmp.ne.s32.totalorder %s184, %s186
      %p190 = scmp.eq.s32.totalorder %s24, 0
      %p191 = por %p189, %p190
      %p192 = scmp.ne.s32.totalorder %s184, %s186
      %p193 = scmp.eq.s32.totalorder %s29, 1
      %p194 = por %p192, %p193
      %p195 = scmp.ne.s32.totalorder %s186, %s187
      %p196 = scmp.eq.s32.totalorder %s29, 0
      %p197 = por %p195, %p196
      %p198 = scmp.ne.s32.totalorder %s186, %s187
      %p199 = scmp.eq.s32.totalorder %s30, 1
      %p200 = por %p198, %p199
      %p202 = scmp.ne.s32.totalorder %s187, %s201
      %p203 = scmp.eq.s32.totalorder %s30, 0
      %p204 = por %p202, %p203
      %s206 = sadd.s32 %s205, 1
      %p209 = scmp.eq.s32.totalorder %s24, 1
      %p210 = scmp.ne.s32.totalorder %s205, %s207
      %p211 = scmp.eq.s32.totalorder %s24, 0
      %p212 = por %p210, %p211
      %p213 = scmp.ne.s32.totalorder %s205, %s207
      %p214 = scmp.eq.s32.totalorder %s29, 1
      %p215 = por %p213, %p214
      %p216 = scmp.ne.s32.totalorder %s207, %s208
      %p217 = scmp.eq.s32.totalorder %s29, 0
      %p218 = por %p216, %p217
      %p219 = scmp.ne.s32.totalorder %s207, %s208
      %p220 = scmp.eq.s32.totalorder %s30, 1
      %p221 = por %p219, %p220
      %p223 = scmp.ne.s32.totalorder %s208, %s222
      %p224 = scmp.eq.s32.totalorder %s30, 0
      %p225 = por %p223, %p224
      %s227 = sadd.s32 %s226, 1
      %p230 = scmp.eq.s32.totalorder %s24, 1
      %p231 = scmp.ne.s32.totalorder %s226, %s228
      %p232 = scmp.eq.s32.totalorder %s24, 0
      %p233 = por %p231, %p232
      %p234 = scmp.ne.s32.totalorder %s226, %s228
      %p235 = scmp.eq.s32.totalorder %s29, 1
      %p236 = por %p234, %p235
      %p237 = scmp.ne.s32.totalorder %s228, %s229
      %p238 = scmp.eq.s32.totalorder %s29, 0
      %p239 = por %p237, %p238
      %p240 = scmp.ne.s32.totalorder %s228, %s229
      %p241 = scmp.eq.s32.totalorder %s30, 1
      %p242 = por %p240, %p241
      %p244 = scmp.ne.s32.totalorder %s229, %s243
      %p245 = scmp.eq.s32.totalorder %s30, 0
      %p246 = por %p244, %p245
      %s248 = sadd.s32 %s247, 1
      %p251 = scmp.eq.s32.totalorder %s24, 1
      %p252 = scmp.ne.s32.totalorder %s247, %s249
      %p253 = scmp.eq.s32.totalorder %s24, 0
      %p254 = por %p252, %p253
      %p255 = scmp.ne.s32.totalorder %s247, %s249
      %p256 = scmp.eq.s32.totalorder %s29, 1
      %p257 = por %p255, %p256
      %p258 = scmp.ne.s32.totalorder %s249, %s250
      %p259 = scmp.eq.s32.totalorder %s29, 0
      %p260 = por %p258, %p259
      %p261 = scmp.ne.s32.totalorder %s249, %s250
      %p262 = scmp.eq.s32.totalorder %s30, 1
      %p263 = por %p261, %p262
      %p265 = scmp.ne.s32.totalorder %s250, %s264
      %p266 = scmp.eq.s32.totalorder %s30, 0
      %p267 = por %p265, %p266
      %s269 = sadd.s32 %s268, 1
      %p272 = scmp.eq.s32.totalorder %s24, 1
      %p273 = scmp.ne.s32.totalorder %s268, %s270
      %p274 = scmp.eq.s32.totalorder %s24, 0
      %p275 = por %p273, %p274
      %p276 = scmp.ne.s32.totalorder %s268, %s270
      %p277 = scmp.eq.s32.totalorder %s29, 1
      %p278 = por %p276, %p277
      %p279 = scmp.ne.s32.totalorder %s270, %s271
      %p280 = scmp.eq.s32.totalorder %s29, 0
      %p281 = por %p279, %p280
      %p282 = scmp.ne.s32.totalorder %s270, %s271
      %p283 = scmp.eq.s32.totalorder %s30, 1
      %p284 = por %p282, %p283
      %p286 = scmp.ne.s32.totalorder %s271, %s285
      %p287 = scmp.eq.s32.totalorder %s30, 0
      %p288 = por %p286, %p287
      %s290 = sadd.s32 %s289, 1
      %p293 = scmp.eq.s32.totalorder %s24, 1
      %p294 = scmp.ne.s32.totalorder %s289, %s291
      %p295 = scmp.eq.s32.totalorder %s24, 0
      %p296 = por %p294, %p295
      %p297 = scmp.ne.s32.totalorder %s289, %s291
      %p298 = scmp.eq.s32.totalorder %s29, 1
      %p299 = por %p297, %p298
      %p300 = scmp.ne.s32.totalorder %s291, %s292
      %p301 = scmp.eq.s32.totalorder %s29, 0
      %p302 = por %p300, %p301
      %p303 = scmp.ne.s32.totalorder %s291, %s292
      %p304 = scmp.eq.s32.totalorder %s30, 1
      %p305 = por %p303, %p304
      %p307 = scmp.ne.s32.totalorder %s292, %s306
      %p308 = scmp.eq.s32.totalorder %s30, 0
      %p309 = por %p307, %p308
      %s310 = ssub.s32 %s24, %s31
      %p311 = scmp.eq.s32.totalorder %s310, 0
      %s313 = sadd.s32 %s312, 1
      %s314 = scalar_select %p311, %s312, %s313
      %p317 = pneg %p311
      %p318 = scmp.eq.s32.totalorder %s24, 1
      %p319 = por %p317, %p318
      %p320 = scmp.ne.s32.totalorder %s312, %s315
      %p321 = scmp.eq.s32.totalorder %s24, 0
      %p322 = por %p320, %p321
      %p323 = scmp.ne.s32.totalorder %s312, %s315
      %p324 = scmp.eq.s32.totalorder %s29, 1
      %p325 = por %p323, %p324
      %p326 = scmp.ne.s32.totalorder %s315, %s316
      %p327 = scmp.eq.s32.totalorder %s29, 0
      %p328 = por %p326, %p327
      %p329 = scmp.ne.s32.totalorder %s315, %s316
      %p330 = scmp.eq.s32.totalorder %s30, 1
      %p331 = por %p329, %p330
      %p333 = scmp.ne.s32.totalorder %s316, %s332
      %p334 = scmp.eq.s32.totalorder %s30, 0
      %p335 = por %p333, %p334
      %p336 = scmp.le.s32.totalorder 1, %s24
      %p337 = scmp.lt.s32.totalorder %s24, 3
      %p338 = pnand %p336, %p337
      %p339 = pneg %p338
      // Predicated region
      $region9: #{tpu_custom_call.1} parent=5 // pred_check
        _
      $region10: #{tpu_custom_call.1} parent=5 // pred_check_branch
        %341 = sbr.rel (%p338) target = $region12
      $region11: #{tpu_custom_call.1} parent=5 // pred_region
        %s342 = ssub.s32 %s24, 1
        // Predicated region
        $region13: #{tpu_custom_call.1} parent=11 // pred_check
          %p343 = pneg %p71
        $region14: #{tpu_custom_call.1} parent=11 // pred_check_branch
          %345 = sbr.rel (%p343) target = $region16
        $region15: #{tpu_custom_call.1} parent=11 // pred_region
          %347 = vsyncadd [#allocation3], 0
          %s348 = sshll.u32 %s1, 4
          %s349 = int_to_ptr.hbm [resolvable:$true] %s348
          %s350 = sshll.u32 [#allocation2], 4
          %s351 = int_to_ptr.vmem [resolvable:$true] %s350
          %356 = dma.hbm_to_vmem [thread:$0]  %s349, 4096, %s351, [#allocation3], 128, 128, 8
        $region16: #{tpu_custom_call.1} parent=11 // pred_fallthru
          _
        // Predicated region
        $region17: #{tpu_custom_call.1} parent=11 // pred_check
          %p357 = pneg %p92
        $region18: #{tpu_custom_call.1} parent=11 // pred_check_branch
          %359 = sbr.rel (%p357) target = $region20
        $region19: #{tpu_custom_call.1} parent=11 // pred_region
          _
        $region20: #{tpu_custom_call.1} parent=11 // pred_fallthru
          _
        // Predicated region
        $region21: #{tpu_custom_call.1} parent=11 // pred_check
          %p360 = pneg %p113
        $region22: #{tpu_custom_call.1} parent=11 // pred_check_branch
          %362 = sbr.rel (%p360) target = $region24
        $region23: #{tpu_custom_call.1} parent=11 // pred_region
          _
        $region24: #{tpu_custom_call.1} parent=11 // pred_fallthru
          _
        // Predicated region
        $region25: #{tpu_custom_call.1} parent=11 // pred_check
          %p363 = pneg %p134
        $region26: #{tpu_custom_call.1} parent=11 // pred_check_branch
          %365 = sbr.rel (%p363) target = $region28
        $region27: #{tpu_custom_call.1} parent=11 // pred_region
          _
        $region28: #{tpu_custom_call.1} parent=11 // pred_fallthru
          _
        // Predicated region
        $region29: #{tpu_custom_call.1} parent=11 // pred_check
          %p366 = pneg %p155
        $region30: #{tpu_custom_call.1} parent=11 // pred_check_branch
          %368 = sbr.rel (%p366) target = $region32
        $region31: #{tpu_custom_call.1} parent=11 // pred_region
          _
        $region32: #{tpu_custom_call.1} parent=11 // pred_fallthru
          _
        // Predicated region
        $region33: #{tpu_custom_call.1} parent=11 // pred_check
          %p369 = pneg %p176
        $region34: #{tpu_custom_call.1} parent=11 // pred_check_branch
          %371 = sbr.rel (%p369) target = $region36
        $region35: #{tpu_custom_call.1} parent=11 // pred_region
          _
        $region36: #{tpu_custom_call.1} parent=11 // pred_fallthru
          _
        // Predicated region
        $region37: #{tpu_custom_call.1} parent=11 // pred_check
          %p372 = pneg %p197
        $region38: #{tpu_custom_call.1} parent=11 // pred_check_branch
          %374 = sbr.rel (%p372) target = $region40
        $region39: #{tpu_custom_call.1} parent=11 // pred_region
          _
        $region40: #{tpu_custom_call.1} parent=11 // pred_fallthru
          _
        // Predicated region
        $region41: #{tpu_custom_call.1} parent=11 // pred_check
          %p375 = pneg %p218
        $region42: #{tpu_custom_call.1} parent=11 // pred_check_branch
          %377 = sbr.rel (%p375) target = $region44
        $region43: #{tpu_custom_call.1} parent=11 // pred_region
          _
        $region44: #{tpu_custom_call.1} parent=11 // pred_fallthru
          _
        // Predicated region
        $region45: #{tpu_custom_call.1} parent=11 // pred_check
          %p378 = pneg %p239
        $region46: #{tpu_custom_call.1} parent=11 // pred_check_branch
          %380 = sbr.rel (%p378) target = $region48
        $region47: #{tpu_custom_call.1} parent=11 // pred_region
          _
        $region48: #{tpu_custom_call.1} parent=11 // pred_fallthru
          _
        // Predicated region
        $region49: #{tpu_custom_call.1} parent=11 // pred_check
          %p381 = pneg %p260
        $region50: #{tpu_custom_call.1} parent=11 // pred_check_branch
          %383 = sbr.rel (%p381) target = $region52
        $region51: #{tpu_custom_call.1} parent=11 // pred_region
          %385 = vsyncadd [#allocation6], 0
          %s387 = sshll.u32 %s10, 4
          %s388 = int_to_ptr.hbm [resolvable:$true] %s387
          %s389 = sshll.u32 [#allocation5], 4
          %s390 = int_to_ptr.vmem [resolvable:$true] %s389
          %392 = dma.hbm_to_vmem [thread:$0]  %s388, 128, %s390, [#allocation6]
        $region52: #{tpu_custom_call.1} parent=11 // pred_fallthru
          _
        // Predicated region
        $region53: #{tpu_custom_call.1} parent=11 // pred_check
          %p393 = pneg %p281
        $region54: #{tpu_custom_call.1} parent=11 // pred_check_branch
          %395 = sbr.rel (%p393) target = $region56
        $region55: #{tpu_custom_call.1} parent=11 // pred_region
          %397 = vsyncadd [#allocation6], 0
          %s399 = sshll.u32 %s11, 4
          %s400 = int_to_ptr.hbm [resolvable:$true] %s399
          %s401 = sshll.u32 [#allocation7], 4
          %s402 = int_to_ptr.vmem [resolvable:$true] %s401
          %404 = dma.hbm_to_vmem [thread:$0]  %s400, 128, %s402, [#allocation6]
        $region56: #{tpu_custom_call.1} parent=11 // pred_fallthru
          _
        // Predicated region
        $region57: #{tpu_custom_call.1} parent=11 // pred_check
          %p405 = pneg %p302
        $region58: #{tpu_custom_call.1} parent=11 // pred_check_branch
          %407 = sbr.rel (%p405) target = $region60
        $region59: #{tpu_custom_call.1} parent=11 // pred_region
          _
        $region60: #{tpu_custom_call.1} parent=11 // pred_fallthru
          _
      $region12: #{tpu_custom_call.1} parent=5 // pred_fallthru
        _
      %p408 = scmp.lt.s32.totalorder %s24, 2
      // Predicated region
      $region61: #{tpu_custom_call.1} parent=5 // pred_check
        %p409 = pneg %p408
      $region62: #{tpu_custom_call.1} parent=5 // pred_check_branch
        %411 = sbr.rel (%p409) target = $region64
      $region63: #{tpu_custom_call.1} parent=5 // pred_region
        // Predicated region
        $region65: #{tpu_custom_call.1} parent=63 // pred_check
          %p412 = pneg %p44
        $region66: #{tpu_custom_call.1} parent=63 // pred_check_branch
          %414 = sbr.rel (%p412) target = $region68
        $region67: #{tpu_custom_call.1} parent=63 // pred_region
          %p415 = scmp.lt.s32.totalorder %s24, 1
          %s416 = scalar_select %p415, %s24, 1
          %s417 = smul.addr %s416, 2
          %s418 = smul.addr %s417, 4
          %s419 = scalar_lea.vmem %s0, %s418
        $region68: #{tpu_custom_call.1} parent=63 // pred_fallthru
          _
      $region64: #{tpu_custom_call.1} parent=5 // pred_fallthru
        _
      %p420 = scmp.le.s32.totalorder 1, %s24
      %p421 = scmp.lt.s32.totalorder %s24, 3
      %p422 = pnand %p420, %p421
      %p423 = pneg %p422
      // Predicated region
      $region69: #{tpu_custom_call.1} parent=5 // pred_check
        _
      $region70: #{tpu_custom_call.1} parent=5 // pred_check_branch
        %425 = sbr.rel (%p422) target = $region72
      $region71: #{tpu_custom_call.1} parent=5 // pred_region
        %s426 = ssub.s32 %s24, 1
        // Predicated region
        $region73: #{tpu_custom_call.1} parent=71 // pred_check
          %p427 = pneg %p71
        $region74: #{tpu_custom_call.1} parent=71 // pred_check_branch
          %429 = sbr.rel (%p427) target = $region76
        $region75: #{tpu_custom_call.1} parent=71 // pred_region
          %431 = dma.done [#allocation3], 4096
        $region76: #{tpu_custom_call.1} parent=71 // pred_fallthru
          _
        // Predicated region
        $region77: #{tpu_custom_call.1} parent=71 // pred_check
          %p432 = pneg %p260
        $region78: #{tpu_custom_call.1} parent=71 // pred_check_branch
          %434 = sbr.rel (%p432) target = $region80
        $region79: #{tpu_custom_call.1} parent=71 // pred_region
          %436 = dma.done [#allocation6], 128
        $region80: #{tpu_custom_call.1} parent=71 // pred_fallthru
          _
        // Predicated region
        $region81: #{tpu_custom_call.1} parent=71 // pred_check
          %p437 = pneg %p281
        $region82: #{tpu_custom_call.1} parent=71 // pred_check_branch
          %439 = sbr.rel (%p437) target = $region84
        $region83: #{tpu_custom_call.1} parent=71 // pred_region
          %441 = dma.done [#allocation6], 128
        $region84: #{tpu_custom_call.1} parent=71 // pred_fallthru
          _
        %p442 = scmp.lt.s32.totalorder %s29, 1
        %s443 = scalar_select %p442, %s29, 1
        %s444 = smul.addr %s443, 2
        %s445 = smul.addr %s444, 4
        %s446 = scalar_lea.vmem %s0, %s445
        %p447 = pneg %p50
        %p448 = pneg %p47
        %p449 = pneg %p71
        %p450 = pneg %p68
        %p451 = pneg %p92
        %p452 = pneg %p89
        %p453 = pneg %p113
        %p454 = pneg %p110
        %p455 = pneg %p134
        %p456 = pneg %p131
        %p457 = pneg %p155
        %p458 = pneg %p152
        %p459 = pneg %p176
        %p460 = pneg %p173
        %p461 = pneg %p197
        %p462 = pneg %p194
        %p463 = pneg %p218
        %p464 = pneg %p215
        %p465 = pneg %p239
        %p466 = pneg %p236
        %p467 = pneg %p260
        %p468 = pneg %p257
        %p469 = pneg %p281
        %p470 = pneg %p278
        %p471 = pneg %p302
        %p472 = pneg %p299
        %p473 = pneg %p328
        %p474 = pneg %p325
        %s475 = sand.u32 %s315, 1
        %s476 = scalar_lea.sflag [#allocation4], %s475
        %s477 = sand.u32 %s315, 1
        %s478 = smul.addr %s477, 8
        %s479 = scalar_lea.vmem [#allocation8], %s478
        %p480 = scmp.lt.s32.totalorder %s29, 1
        %s481 = scalar_select %p480, %s29, 1
        %s482 = smul.addr %s481, 2
        %s483 = smul.addr %s482, 4
        %s484 = scalar_lea.vmem %s0, %s483
        %v485 = vld [vmem:[%s2] sm:$0x1f]
        %v486 = vld [vmem:[%s484] sm:$0xff]
        %v487 = vld [vmem:[#allocation2] sm:$0xff]
        %v488 = vld [vmem:[#allocation2 + $0x8] sm:$0xff]
        %v489 = vld [vmem:[#allocation2 + $0x10] sm:$0xff]
        %v490 = vld [vmem:[#allocation2 + $0x18] sm:$0xff]
        %v491 = vld [vmem:[#allocation2 + $0x20] sm:$0xff]
        %v492 = vld [vmem:[#allocation2 + $0x28] sm:$0xff]
        %v493 = vld [vmem:[#allocation2 + $0x30] sm:$0xff]
        %v494 = vld [vmem:[#allocation2 + $0x38] sm:$0xff]
        %v495 = vld [vmem:[#allocation2 + $0x40] sm:$0xff]
        %v496 = vld [vmem:[#allocation2 + $0x48] sm:$0xff]
        %v497 = vld [vmem:[#allocation2 + $0x50] sm:$0xff]
        %v498 = vld [vmem:[#allocation2 + $0x58] sm:$0xff]
        %v499 = vld [vmem:[#allocation2 + $0x60] sm:$0xff]
        %v500 = vld [vmem:[#allocation2 + $0x68] sm:$0xff]
        %v501 = vld [vmem:[#allocation2 + $0x70] sm:$0xff]
        %v502 = vld [vmem:[#allocation2 + $0x78] sm:$0xff]
        %v503 = vld [vmem:[#allocation2 + $0x80] sm:$0xff]
        %v504 = vld [vmem:[#allocation2 + $0x88] sm:$0xff]
        %v505 = vld [vmem:[#allocation2 + $0x90] sm:$0xff]
        %v506 = vld [vmem:[#allocation2 + $0x98] sm:$0xff]
        %v507 = vld [vmem:[#allocation2 + $0xa0] sm:$0xff]
        %v508 = vld [vmem:[#allocation2 + $0xa8] sm:$0xff]
        %v509 = vld [vmem:[#allocation2 + $0xb0] sm:$0xff]
        %v510 = vld [vmem:[#allocation2 + $0xb8] sm:$0xff]
        %v511 = vld [vmem:[#allocation2 + $0xc0] sm:$0xff]
        %v512 = vld [vmem:[#allocation2 + $0xc8] sm:$0xff]
        %v513 = vld [vmem:[#allocation2 + $0xd0] sm:$0xff]
        %v514 = vld [vmem:[#allocation2 + $0xd8] sm:$0xff]
        %v515 = vld [vmem:[#allocation2 + $0xe0] sm:$0xff]
        %v516 = vld [vmem:[#allocation2 + $0xe8] sm:$0xff]
        %v517 = vld [vmem:[#allocation2 + $0xf0] sm:$0xff]
        %v518 = vld [vmem:[#allocation2 + $0xf8] sm:$0xff]
        %520 = vst [vmem:[#allocation1] ss:$2 sm:$0xff] %v486
        %v521 = vld.sshfl [vmem:[#allocation1] sm:$0xff pattern:$0x75316420]
        %v522 = vld.sshfl [vmem:[#allocation1 + $0x8] sm:$0xff pattern:$0x75316420]
        %525 = vmatpush.msra.mxu0 %v502
        %526 = vmatpush.msra.mxu0 %v501
        %527 = vmatpush.msra.mxu0 %v500
        %528 = vmatpush.msra.mxu0 %v499
        %529 = vmatpush.msra.mxu0 %v498
        %530 = vmatpush.msra.mxu0 %v497
        %531 = vmatpush.msra.mxu0 %v496
        %532 = vmatpush.msra.mxu0 %v495
        %533 = vmatpush.msra.mxu0 %v494
        %534 = vmatpush.msra.mxu0 %v493
        %535 = vmatpush.msra.mxu0 %v492
        %536 = vmatpush.msra.mxu0 %v491
        %537 = vmatpush.msra.mxu0 %v490
        %538 = vmatpush.msra.mxu0 %v489
        %539 = vmatpush.msra.mxu0 %v488
        %540 = vmatpush.msra.mxu0 %v487
        %541 = vmatmul.f32.gmra.mxu0 %v521
        %v542 = vpop.f32.mrf.mxu0
        %v543 = vadd.f32 0.0, %v542
        %544 = vdwg.mxu0
        %545 = vmatpush.msra.mxu0 %v518
        %546 = vmatpush.msra.mxu0 %v517
        %547 = vmatpush.msra.mxu0 %v516
        %548 = vmatpush.msra.mxu0 %v515
        %549 = vmatpush.msra.mxu0 %v514
        %550 = vmatpush.msra.mxu0 %v513
        %551 = vmatpush.msra.mxu0 %v512
        %552 = vmatpush.msra.mxu0 %v511
        %553 = vmatpush.msra.mxu0 %v510
        %554 = vmatpush.msra.mxu0 %v509
        %555 = vmatpush.msra.mxu0 %v508
        %556 = vmatpush.msra.mxu0 %v507
        %557 = vmatpush.msra.mxu0 %v506
        %558 = vmatpush.msra.mxu0 %v505
        %559 = vmatpush.msra.mxu0 %v504
        %560 = vmatpush.msra.mxu0 %v503
        %561 = vmatmul.f32.gmra.mxu0 %v522
        %v562 = vpop.f32.mrf.mxu0
        %v563 = vadd.f32 %v543, %v562
        %564 = vdwg.mxu0
        %v565 = vld [vmem:[%s3] sm:$0xff]
        %v566 = vld [vmem:[%s4] sm:$0xff]
        %v567 = vld [vmem:[%s5] sm:$0xff]
        %v568 = vld [vmem:[%s6] sm:$0xff]
        %v569 = vld [vmem:[%s7] sm:$0xff]
        %571 = vset.pattern.permute.xlu0 0
        %572 = vperm.xlu0 %571, %v566
        %v573 = vpop.permute.xlu0 %572
        %vm575 = vcmask 31744
        %v577 = vsel %vm575, %v565, 0
        %vm579 = vcmask 1043456
        %v581 = vsel %vm579, %v563, 0
        %583 = vmatpush.msra.mxu0 0.0
        %584 = vmatpush.msra.mxu0 0.0
        %585 = vmatpush.msra.mxu0 0.0
        %586 = vmatpush.msra.mxu0 0.0
        %587 = vmatpush.msra.mxu0 0.0
        %588 = vmatpush.msra.mxu0 0.0
        %589 = vmatpush.msra.mxu0 0.0
        %590 = vmatpush.msra.mxu0 0.0
        %591 = vmatpush.msra.mxu0 0.0
        %592 = vmatpush.msra.mxu0 0.0
        %593 = vmatpush.msra.mxu0 0.0
        %594 = vmatpush.msra.mxu0 0.0
        %595 = vmatpush.msra.mxu0 0.0
        %596 = vmatpush.msra.mxu0 0.0
        %597 = vmatpush.msra.mxu0 0.0
        %598 = vmatpush.msra.mxu0 %v581
        %599 = vmatmul.f32.gmra.mxu0 %v577
        %v600 = vpop.f32.mrf.mxu0
        %v601 = vadd.f32 %v573, %v600
        %602 = vdwg.mxu0
        %v603 = vmax.f32 %v601, 0.0
        %v604 = vperm.slane %v485, 0
        %v605 = vmul.f32 %v603, %v604
        %606 = vrot.lane.b32.xlu0 %v605, 1
        %v607 = vpop.permute.xlu0 %606
        %v608 = vperm.slane %v485, 1
        %v609 = vmul.f32 %v607, %v608
        %610 = vrot.lane.b32.xlu0 %v605, 127
        %v611 = vpop.permute.xlu0 %610
        %v612 = vperm.slane %v485, 2
        %v613 = vmul.f32 %v611, %v612
        %615 = vset.pattern.permute.xlu0 0
        %616 = vperm.xlu0 %615, %v567
        %v617 = vpop.permute.xlu0 %616
        %v619 = vmul.f32 %v609, %v617
        %620 = vset.pattern.permute.xlu0 1
        %621 = vperm.xlu0 %620, %v567
        %v622 = vpop.permute.xlu0 %621
        %v624 = vmul.f32 %v605, %v622
        %v625 = vadd.f32 %v619, %v624
        %626 = vset.pattern.permute.xlu0 2
        %627 = vperm.xlu0 %626, %v567
        %v628 = vpop.permute.xlu0 %627
        %v630 = vmul.f32 %v613, %v628
        %v631 = vadd.f32 %v625, %v630
        %632 = vset.pattern.permute.xlu0 3
        %633 = vperm.xlu0 %632, %v567
        %v634 = vpop.permute.xlu0 %633
        %v636 = vadd.f32 %v631, %v634
        %v637 = vmax.f32 %v636, 0.0
        %638 = vrot.lane.b32.xlu0 %v637, 8
        %v639 = vpop.permute.xlu0 %638
        %v640 = vperm.slane %v485, 3
        %v641 = vmul.f32 %v639, %v640
        %642 = vrot.lane.b32.xlu0 %v637, 120
        %v643 = vpop.permute.xlu0 %642
        %v644 = vperm.slane %v485, 4
        %v645 = vmul.f32 %v643, %v644
        %646 = vset.pattern.permute.xlu0 4
        %647 = vperm.xlu0 %646, %v567
        %v648 = vpop.permute.xlu0 %647
        %v650 = vmul.f32 %v641, %v648
        %651 = vset.pattern.permute.xlu0 5
        %652 = vperm.xlu0 %651, %v567
        %v653 = vpop.permute.xlu0 %652
        %v655 = vmul.f32 %v637, %v653
        %v656 = vadd.f32 %v650, %v655
        %657 = vset.pattern.permute.xlu0 6
        %658 = vperm.xlu0 %657, %v567
        %v659 = vpop.permute.xlu0 %658
        %v661 = vmul.f32 %v645, %v659
        %v662 = vadd.f32 %v656, %v661
        %663 = vset.pattern.permute.xlu0 7
        %664 = vperm.xlu0 %663, %v567
        %v665 = vpop.permute.xlu0 %664
        %v667 = vadd.f32 %v662, %v665
        %v668 = vmax.f32 %v667, 0.0
        %670 = vset.pattern.permute.xlu0 0
        %671 = vperm.xlu0 %670, %v569
        %v672 = vpop.permute.xlu0 %671
        %vm674 = vcmask 130048
        %v676 = vsel %vm674, %v568, 0
        %678 = vmatpush.msra.mxu0 0.0
        %679 = vmatpush.msra.mxu0 0.0
        %680 = vmatpush.msra.mxu0 0.0
        %681 = vmatpush.msra.mxu0 0.0
        %682 = vmatpush.msra.mxu0 0.0
        %683 = vmatpush.msra.mxu0 0.0
        %684 = vmatpush.msra.mxu0 0.0
        %685 = vmatpush.msra.mxu0 0.0
        %686 = vmatpush.msra.mxu0 0.0
        %687 = vmatpush.msra.mxu0 0.0
        %688 = vmatpush.msra.mxu0 0.0
        %689 = vmatpush.msra.mxu0 0.0
        %690 = vmatpush.msra.mxu0 0.0
        %691 = vmatpush.msra.mxu0 0.0
        %692 = vmatpush.msra.mxu0 %v668
        %693 = vmatpush.msra.mxu0 %v605
        %694 = vmatmul.f32.gmra.mxu0 %v676
        %v695 = vpop.f32.mrf.mxu0
        %v696 = vadd.f32 %v672, %v695
        %697 = vdwg.mxu0
        %v698 = vmax.f32 %v696, 0.0
        %v699 = vld [vmem:[%s8] sm:$0xff]
        %v700 = vld [vmem:[%s9] sm:$0xff]
        %v701 = vld [vmem:[#allocation5] sm:$0xff]
        %v702 = vld [vmem:[#allocation7] sm:$0xff]
        %v703 = vld [vmem:[%s12] sm:$0xff]
        %705 = vset.pattern.permute.xlu0 0
        %706 = vperm.xlu0 %705, %v700
        %v707 = vpop.permute.xlu0 %706
        %vm709 = vcmask 64512
        %v711 = vsel %vm709, %v699, 0
        %713 = vmatpush.msra.mxu0 0.0
        %714 = vmatpush.msra.mxu0 0.0
        %715 = vmatpush.msra.mxu0 0.0
        %716 = vmatpush.msra.mxu0 0.0
        %717 = vmatpush.msra.mxu0 0.0
        %718 = vmatpush.msra.mxu0 0.0
        %719 = vmatpush.msra.mxu0 0.0
        %720 = vmatpush.msra.mxu0 0.0
        %721 = vmatpush.msra.mxu0 0.0
        %722 = vmatpush.msra.mxu0 0.0
        %723 = vmatpush.msra.mxu0 0.0
        %724 = vmatpush.msra.mxu0 0.0
        %725 = vmatpush.msra.mxu0 0.0
        %726 = vmatpush.msra.mxu0 0.0
        %727 = vmatpush.msra.mxu0 0.0
        %728 = vmatpush.msra.mxu0 %v698
        %729 = vmatmul.f32.gmra.mxu0 %v711
        %v730 = vpop.f32.mrf.mxu0
        %v731 = vadd.f32 %v707, %v730
        %732 = vdwg.mxu0
        %v733 = vmax.f32 %v731, 0.0
        %v734 = vmul.f32 %v733, %v604
        %735 = vrot.lane.b32.xlu0 %v734, 1
        %v736 = vpop.permute.xlu0 %735
        %v737 = vmul.f32 %v736, %v608
        %738 = vrot.lane.b32.xlu0 %v734, 127
        %v739 = vpop.permute.xlu0 %738
        %v740 = vmul.f32 %v739, %v612
        %742 = vset.pattern.permute.xlu0 0
        %743 = vperm.xlu0 %742, %v701
        %v744 = vpop.permute.xlu0 %743
        %v746 = vmul.f32 %v737, %v744
        %747 = vset.pattern.permute.xlu0 1
        %748 = vperm.xlu0 %747, %v701
        %v749 = vpop.permute.xlu0 %748
        %v751 = vmul.f32 %v734, %v749
        %v752 = vadd.f32 %v746, %v751
        %753 = vset.pattern.permute.xlu0 2
        %754 = vperm.xlu0 %753, %v701
        %v755 = vpop.permute.xlu0 %754
        %v757 = vmul.f32 %v740, %v755
        %v758 = vadd.f32 %v752, %v757
        %759 = vset.pattern.permute.xlu0 3
        %760 = vperm.xlu0 %759, %v701
        %v761 = vpop.permute.xlu0 %760
        %v763 = vadd.f32 %v758, %v761
        %v764 = vmax.f32 %v763, 0.0
        %765 = vrot.lane.b32.xlu0 %v764, 8
        %v766 = vpop.permute.xlu0 %765
        %v767 = vmul.f32 %v766, %v640
        %768 = vrot.lane.b32.xlu0 %v764, 120
        %v769 = vpop.permute.xlu0 %768
        %v770 = vmul.f32 %v769, %v644
        %771 = vset.pattern.permute.xlu0 4
        %772 = vperm.xlu0 %771, %v701
        %v773 = vpop.permute.xlu0 %772
        %v775 = vmul.f32 %v767, %v773
        %776 = vset.pattern.permute.xlu0 5
        %777 = vperm.xlu0 %776, %v701
        %v778 = vpop.permute.xlu0 %777
        %v780 = vmul.f32 %v764, %v778
        %v781 = vadd.f32 %v775, %v780
        %782 = vset.pattern.permute.xlu0 6
        %783 = vperm.xlu0 %782, %v701
        %v784 = vpop.permute.xlu0 %783
        %v786 = vmul.f32 %v770, %v784
        %v787 = vadd.f32 %v781, %v786
        %788 = vset.pattern.permute.xlu0 7
        %789 = vperm.xlu0 %788, %v701
        %v790 = vpop.permute.xlu0 %789
        %v792 = vadd.f32 %v787, %v790
        %v793 = vmax.f32 %v792, 0.0
        %795 = vset.pattern.permute.xlu0 0
        %796 = vperm.xlu0 %795, %v703
        %v797 = vpop.permute.xlu0 %796
        %v800 = vsel %vm674, %v702, 0
        %802 = vmatpush.msra.mxu0 0.0
        %803 = vmatpush.msra.mxu0 0.0
        %804 = vmatpush.msra.mxu0 0.0
        %805 = vmatpush.msra.mxu0 0.0
        %806 = vmatpush.msra.mxu0 0.0
        %807 = vmatpush.msra.mxu0 0.0
        %808 = vmatpush.msra.mxu0 0.0
        %809 = vmatpush.msra.mxu0 0.0
        %810 = vmatpush.msra.mxu0 0.0
        %811 = vmatpush.msra.mxu0 0.0
        %812 = vmatpush.msra.mxu0 0.0
        %813 = vmatpush.msra.mxu0 0.0
        %814 = vmatpush.msra.mxu0 0.0
        %815 = vmatpush.msra.mxu0 0.0
        %816 = vmatpush.msra.mxu0 %v793
        %817 = vmatpush.msra.mxu0 %v734
        %818 = vmatmul.f32.gmra.mxu0 %v800
        %v819 = vpop.f32.mrf.mxu0
        %v820 = vadd.f32 %v797, %v819
        %821 = vdwg.mxu0
        %v822 = vmax.f32 %v820, 0.0
        %823 = vst [vmem:[%s479] sm:$0xff] %v822
        %s824 = sand.u32 %s315, 1
        %s825 = scalar_lea.sflag [#allocation4], %s824
        %s826 = sand.u32 %s315, 1
        %s827 = smul.addr %s826, 8
        %s828 = scalar_lea.vmem [#allocation8], %s827
        // Predicated region
        $region85: #{tpu_custom_call.1} parent=71 // pred_check
          %p829 = pneg %p325
        $region86: #{tpu_custom_call.1} parent=71 // pred_check_branch
          %831 = sbr.rel (%p829) target = $region88
        $region87: #{tpu_custom_call.1} parent=71 // pred_region
          %833 = vsyncadd %s825, 0
          %s834 = smul.addr %s29, 8
          %s835 = scalar_lea.hbm %s13, %s834
          %s837 = sshll.u32 %s828, 4
          %s838 = int_to_ptr.vmem [resolvable:$true] %s837
          %s839 = sshll.u32 %s835, 4
          %s840 = int_to_ptr.hbm [resolvable:$true] %s839
          %842 = dma.vmem_to_hbm [thread:$0]  %s838, 128, %s840, %s825
        $region88: #{tpu_custom_call.1} parent=71 // pred_fallthru
          _
      $region72: #{tpu_custom_call.1} parent=5 // pred_fallthru
        _
      %p843 = scmp.le.s32.totalorder 2, %s24
      // Predicated region
      $region89: #{tpu_custom_call.1} parent=5 // pred_check
        %p844 = pneg %p843
      $region90: #{tpu_custom_call.1} parent=5 // pred_check_branch
        %846 = sbr.rel (%p844) target = $region92
      $region91: #{tpu_custom_call.1} parent=5 // pred_region
        %s847 = ssub.s32 %s24, 2
        // Predicated region
        $region93: #{tpu_custom_call.1} parent=91 // pred_check
          %p848 = pneg %p331
        $region94: #{tpu_custom_call.1} parent=91 // pred_check_branch
          %850 = sbr.rel (%p848) target = $region96
        $region95: #{tpu_custom_call.1} parent=91 // pred_region
          %s851 = sand.u32 %s316, 1
          %s852 = scalar_lea.sflag [#allocation4], %s851
          %s853 = sand.u32 %s316, 1
          %s854 = smul.addr %s853, 8
          %s855 = scalar_lea.vmem [#allocation8], %s854
          %857 = dma.done %s852, 128
        $region96: #{tpu_custom_call.1} parent=91 // pred_fallthru
          _
      $region92: #{tpu_custom_call.1} parent=5 // pred_fallthru
        _
    $region6: #{tpu_custom_call.1} parent=1 // loop_footer
      %s28 = sadd.s32 1, %s24
    $region7: #{tpu_custom_call.1} parent=1 // loop_footer_branch
      %23 = sbr.rel target = $region3
    $region8: #{tpu_custom_call.1} parent=1 // loop_exit
      _
    %858 = vsyncpa [#allocation3], 1
    %s859 = scalar_lea.sflag [#allocation3], 1
    %860 = vsyncpa %s859, 1
    %861 = vsyncpa [#allocation6], 1
    %862 = vsyncpa [#allocation4], 1
    %s863 = scalar_lea.sflag [#allocation4], 1
    %864 = vsyncpa %s863, 1

// kernel: tpu_custom_call.1
$region0: #{tpu_custom_call.1}
  #allocation0 [shape = 'u32[]', space=smem, size = 0x4, offset = 0x4, fixed_abs, tag = 'smem constant byte address 0x4 - core index']
  #allocation1 [shape = 'u32[72,128]{1,0:T(1,128)}', space=vmem, size = 0x9000, scoped, tag = 'internal scratch']
  %s0 = inlined_call_operand.vmem [shape: f32[2,4,256], index: 0, kind: input, shape index: {}]
  %s1 = inlined_call_operand.hbm [shape: f32[256,128], index: 1, kind: input, shape index: {}]
  %s2 = inlined_call_operand.vmem [shape: f32[5,128], index: 2, kind: input, shape index: {}]
  %s3 = inlined_call_operand.vmem [shape: f32[8,4], index: 3, kind: input, shape index: {}]
  %s4 = inlined_call_operand.vmem [shape: f32[8,1], index: 4, kind: input, shape index: {}]
  %s5 = inlined_call_operand.vmem [shape: f32[8,8], index: 5, kind: input, shape index: {}]
  %s6 = inlined_call_operand.vmem [shape: f32[8,16], index: 6, kind: input, shape index: {}]
  %s7 = inlined_call_operand.vmem [shape: f32[8,1], index: 7, kind: input, shape index: {}]
  %s8 = inlined_call_operand.vmem [shape: f32[8,8], index: 8, kind: input, shape index: {}]
  %s9 = inlined_call_operand.vmem [shape: f32[8,1], index: 9, kind: input, shape index: {}]
  %s10 = inlined_call_operand.hbm [shape: f32[8,8], index: 10, kind: input, shape index: {}]
  %s11 = inlined_call_operand.hbm [shape: f32[8,16], index: 11, kind: input, shape index: {}]
  %s12 = inlined_call_operand.vmem [shape: f32[8,1], index: 12, kind: input, shape index: {}]
  %s13 = inlined_call_operand.hbm [shape: f32[2,8,128], index: 13, kind: output, shape index: {}]
  %s14 = sld [smem:[#allocation0]]
  $region97: #{tpu_custom_call.1} parent=0
    _
  %s16 = ssub.s32 1, %s14
  %s17 = scalar_select 0, %s16, %s14
  $region1: #{tpu_custom_call.1} parent=0
    #allocation2 [shape = 'u8[131072]{0}', space=vmem, size = 0x20000, scoped, tag = 'input window, operand 1, single buffered']
    #allocation3 [shape = 's32[2]{0}', space=sflag, size = 0x8, scoped, tag = 'scoped memory for tpu_custom_call.1']
    #allocation4 [shape = 's32[2]{0}', space=sflag, size = 0x8, scoped, tag = 'scoped memory for tpu_custom_call.1']
    #allocation5 [shape = 'u8[4096]{0}', space=vmem, size = 0x1000, scoped, tag = 'input window, operand 10, single buffered']
    #allocation6 [shape = 's32[1]{0}', space=sflag, size = 0x4, scoped, tag = 'scoped memory for tpu_custom_call.1']
    #allocation7 [shape = 'u8[4096]{0}', space=vmem, size = 0x1000, scoped, tag = 'input window, operand 11, single buffered']
    #allocation8 [shape = 'u8[8192]{0}', space=vmem, size = 0x2000, scoped, tag = 'output window, operand 0']
    %18 = vsyncpa [#allocation3], 0
    %19 = vsyncpa [#allocation6], 0
    %20 = vsyncpa [#allocation4], 0
    %s21 = scalar_lea.sflag [#allocation4], 1
    %22 = vsyncpa %s21, 0
    loop: start=0, step=1, limit=4
    $region2: #{tpu_custom_call.1} parent=1 // loop_pre_header
      _
    $region3: #{tpu_custom_call.1} parent=1 // loop_header
      %s24 = sphi 0, %s28
      %p25 = scmp.ge.s32.totalorder %s24, 4
      %s34 = sphi 0, %s36
      %s37 = sphi 0, %s34
      %s38 = sphi 0, %s37
      %s54 = sphi 0, %s38
      %s58 = sphi 0, %s58
      %s60 = sphi 0, %s58
      %s61 = sphi 0, %s60
      %s75 = sphi 0, %s61
      %s79 = sphi 0, %s79
      %s81 = sphi 0, %s79
      %s82 = sphi 0, %s81
      %s96 = sphi 0, %s82
      %s100 = sphi 0, %s100
      %s102 = sphi 0, %s100
      %s103 = sphi 0, %s102
      %s117 = sphi 0, %s103
      %s121 = sphi 0, %s121
      %s123 = sphi 0, %s121
      %s124 = sphi 0, %s123
      %s138 = sphi 0, %s124
      %s142 = sphi 0, %s142
      %s144 = sphi 0, %s142
      %s145 = sphi 0, %s144
      %s159 = sphi 0, %s145
      %s163 = sphi 0, %s163
      %s165 = sphi 0, %s163
      %s166 = sphi 0, %s165
      %s180 = sphi 0, %s166
      %s184 = sphi 0, %s184
      %s186 = sphi 0, %s184
      %s187 = sphi 0, %s186
      %s201 = sphi 0, %s187
      %s205 = sphi 0, %s205
      %s207 = sphi 0, %s205
      %s208 = sphi 0, %s207
      %s222 = sphi 0, %s208
      %s226 = sphi 0, %s226
      %s228 = sphi 0, %s226
      %s229 = sphi 0, %s228
      %s243 = sphi 0, %s229
      %s247 = sphi 0, %s247
      %s249 = sphi 0, %s247
      %s250 = sphi 0, %s249
      %s264 = sphi 0, %s250
      %s268 = sphi 0, %s268
      %s270 = sphi 0, %s268
      %s271 = sphi 0, %s270
      %s285 = sphi 0, %s271
      %s289 = sphi 0, %s289
      %s291 = sphi 0, %s289
      %s292 = sphi 0, %s291
      %s306 = sphi 0, %s292
      %s312 = sphi 0, %s314
      %s315 = sphi 0, %s312
      %s316 = sphi 0, %s315
      %s332 = sphi 0, %s316
    $region4: #{tpu_custom_call.1} parent=1 // loop_header_branch
      %27 = sbr.rel (%p25) target = $region8
    $region5: #{tpu_custom_call.1} parent=1 // loop_body
      %s29 = ssub.s32 %s24, 1
      %s30 = ssub.s32 %s24, 2
      %s31 = sadd.s32 %s24, 1
      %s32 = ssub.s32 %s24, %s31
      %p33 = scmp.eq.s32.totalorder %s32, 0
      %s35 = sadd.s32 %s34, 1
      %s36 = scalar_select %p33, %s34, %s35
      %p39 = pneg %p33
      %p40 = scmp.eq.s32.totalorder %s24, 1
      %p41 = por %p39, %p40
      %p42 = scmp.ne.s32.totalorder %s34, %s37
      %p43 = scmp.eq.s32.totalorder %s24, 0
      %p44 = por %p42, %p43
      %p45 = scmp.ne.s32.totalorder %s34, %s37
      %p46 = scmp.eq.s32.totalorder %s29, 1
      %p47 = por %p45, %p46
      %p48 = scmp.ne.s32.totalorder %s37, %s38
      %p49 = scmp.eq.s32.totalorder %s29, 0
      %p50 = por %p48, %p49
      %p51 = scmp.ne.s32.totalorder %s37, %s38
      %p52 = scmp.eq.s32.totalorder %s30, 1
      %p53 = por %p51, %p52
      %p55 = scmp.ne.s32.totalorder %s38, %s54
      %p56 = scmp.eq.s32.totalorder %s30, 0
      %p57 = por %p55, %p56
      %s59 = sadd.s32 %s58, 1
      %p62 = scmp.eq.s32.totalorder %s24, 1
      %p63 = scmp.ne.s32.totalorder %s58, %s60
      %p64 = scmp.eq.s32.totalorder %s24, 0
      %p65 = por %p63, %p64
      %p66 = scmp.ne.s32.totalorder %s58, %s60
      %p67 = scmp.eq.s32.totalorder %s29, 1
      %p68 = por %p66, %p67
      %p69 = scmp.ne.s32.totalorder %s60, %s61
      %p70 = scmp.eq.s32.totalorder %s29, 0
      %p71 = por %p69, %p70
      %p72 = scmp.ne.s32.totalorder %s60, %s61
      %p73 = scmp.eq.s32.totalorder %s30, 1
      %p74 = por %p72, %p73
      %p76 = scmp.ne.s32.totalorder %s61, %s75
      %p77 = scmp.eq.s32.totalorder %s30, 0
      %p78 = por %p76, %p77
      %s80 = sadd.s32 %s79, 1
      %p83 = scmp.eq.s32.totalorder %s24, 1
      %p84 = scmp.ne.s32.totalorder %s79, %s81
      %p85 = scmp.eq.s32.totalorder %s24, 0
      %p86 = por %p84, %p85
      %p87 = scmp.ne.s32.totalorder %s79, %s81
      %p88 = scmp.eq.s32.totalorder %s29, 1
      %p89 = por %p87, %p88
      %p90 = scmp.ne.s32.totalorder %s81, %s82
      %p91 = scmp.eq.s32.totalorder %s29, 0
      %p92 = por %p90, %p91
      %p93 = scmp.ne.s32.totalorder %s81, %s82
      %p94 = scmp.eq.s32.totalorder %s30, 1
      %p95 = por %p93, %p94
      %p97 = scmp.ne.s32.totalorder %s82, %s96
      %p98 = scmp.eq.s32.totalorder %s30, 0
      %p99 = por %p97, %p98
      %s101 = sadd.s32 %s100, 1
      %p104 = scmp.eq.s32.totalorder %s24, 1
      %p105 = scmp.ne.s32.totalorder %s100, %s102
      %p106 = scmp.eq.s32.totalorder %s24, 0
      %p107 = por %p105, %p106
      %p108 = scmp.ne.s32.totalorder %s100, %s102
      %p109 = scmp.eq.s32.totalorder %s29, 1
      %p110 = por %p108, %p109
      %p111 = scmp.ne.s32.totalorder %s102, %s103
      %p112 = scmp.eq.s32.totalorder %s29, 0
      %p113 = por %p111, %p112
      %p114 = scmp.ne.s32.totalorder %s102, %s103
      %p115 = scmp.eq.s32.totalorder %s30, 1
      %p116 = por %p114, %p115
      %p118 = scmp.ne.s32.totalorder %s103, %s117
      %p119 = scmp.eq.s32.totalorder %s30, 0
      %p120 = por %p118, %p119
      %s122 = sadd.s32 %s121, 1
      %p125 = scmp.eq.s32.totalorder %s24, 1
      %p126 = scmp.ne.s32.totalorder %s121, %s123
      %p127 = scmp.eq.s32.totalorder %s24, 0
      %p128 = por %p126, %p127
      %p129 = scmp.ne.s32.totalorder %s121, %s123
      %p130 = scmp.eq.s32.totalorder %s29, 1
      %p131 = por %p129, %p130
      %p132 = scmp.ne.s32.totalorder %s123, %s124
      %p133 = scmp.eq.s32.totalorder %s29, 0
      %p134 = por %p132, %p133
      %p135 = scmp.ne.s32.totalorder %s123, %s124
      %p136 = scmp.eq.s32.totalorder %s30, 1
      %p137 = por %p135, %p136
      %p139 = scmp.ne.s32.totalorder %s124, %s138
      %p140 = scmp.eq.s32.totalorder %s30, 0
      %p141 = por %p139, %p140
      %s143 = sadd.s32 %s142, 1
      %p146 = scmp.eq.s32.totalorder %s24, 1
      %p147 = scmp.ne.s32.totalorder %s142, %s144
      %p148 = scmp.eq.s32.totalorder %s24, 0
      %p149 = por %p147, %p148
      %p150 = scmp.ne.s32.totalorder %s142, %s144
      %p151 = scmp.eq.s32.totalorder %s29, 1
      %p152 = por %p150, %p151
      %p153 = scmp.ne.s32.totalorder %s144, %s145
      %p154 = scmp.eq.s32.totalorder %s29, 0
      %p155 = por %p153, %p154
      %p156 = scmp.ne.s32.totalorder %s144, %s145
      %p157 = scmp.eq.s32.totalorder %s30, 1
      %p158 = por %p156, %p157
      %p160 = scmp.ne.s32.totalorder %s145, %s159
      %p161 = scmp.eq.s32.totalorder %s30, 0
      %p162 = por %p160, %p161
      %s164 = sadd.s32 %s163, 1
      %p167 = scmp.eq.s32.totalorder %s24, 1
      %p168 = scmp.ne.s32.totalorder %s163, %s165
      %p169 = scmp.eq.s32.totalorder %s24, 0
      %p170 = por %p168, %p169
      %p171 = scmp.ne.s32.totalorder %s163, %s165
      %p172 = scmp.eq.s32.totalorder %s29, 1
      %p173 = por %p171, %p172
      %p174 = scmp.ne.s32.totalorder %s165, %s166
      %p175 = scmp.eq.s32.totalorder %s29, 0
      %p176 = por %p174, %p175
      %p177 = scmp.ne.s32.totalorder %s165, %s166
      %p178 = scmp.eq.s32.totalorder %s30, 1
      %p179 = por %p177, %p178
      %p181 = scmp.ne.s32.totalorder %s166, %s180
      %p182 = scmp.eq.s32.totalorder %s30, 0
      %p183 = por %p181, %p182
      %s185 = sadd.s32 %s184, 1
      %p188 = scmp.eq.s32.totalorder %s24, 1
      %p189 = scmp.ne.s32.totalorder %s184, %s186
      %p190 = scmp.eq.s32.totalorder %s24, 0
      %p191 = por %p189, %p190
      %p192 = scmp.ne.s32.totalorder %s184, %s186
      %p193 = scmp.eq.s32.totalorder %s29, 1
      %p194 = por %p192, %p193
      %p195 = scmp.ne.s32.totalorder %s186, %s187
      %p196 = scmp.eq.s32.totalorder %s29, 0
      %p197 = por %p195, %p196
      %p198 = scmp.ne.s32.totalorder %s186, %s187
      %p199 = scmp.eq.s32.totalorder %s30, 1
      %p200 = por %p198, %p199
      %p202 = scmp.ne.s32.totalorder %s187, %s201
      %p203 = scmp.eq.s32.totalorder %s30, 0
      %p204 = por %p202, %p203
      %s206 = sadd.s32 %s205, 1
      %p209 = scmp.eq.s32.totalorder %s24, 1
      %p210 = scmp.ne.s32.totalorder %s205, %s207
      %p211 = scmp.eq.s32.totalorder %s24, 0
      %p212 = por %p210, %p211
      %p213 = scmp.ne.s32.totalorder %s205, %s207
      %p214 = scmp.eq.s32.totalorder %s29, 1
      %p215 = por %p213, %p214
      %p216 = scmp.ne.s32.totalorder %s207, %s208
      %p217 = scmp.eq.s32.totalorder %s29, 0
      %p218 = por %p216, %p217
      %p219 = scmp.ne.s32.totalorder %s207, %s208
      %p220 = scmp.eq.s32.totalorder %s30, 1
      %p221 = por %p219, %p220
      %p223 = scmp.ne.s32.totalorder %s208, %s222
      %p224 = scmp.eq.s32.totalorder %s30, 0
      %p225 = por %p223, %p224
      %s227 = sadd.s32 %s226, 1
      %p230 = scmp.eq.s32.totalorder %s24, 1
      %p231 = scmp.ne.s32.totalorder %s226, %s228
      %p232 = scmp.eq.s32.totalorder %s24, 0
      %p233 = por %p231, %p232
      %p234 = scmp.ne.s32.totalorder %s226, %s228
      %p235 = scmp.eq.s32.totalorder %s29, 1
      %p236 = por %p234, %p235
      %p237 = scmp.ne.s32.totalorder %s228, %s229
      %p238 = scmp.eq.s32.totalorder %s29, 0
      %p239 = por %p237, %p238
      %p240 = scmp.ne.s32.totalorder %s228, %s229
      %p241 = scmp.eq.s32.totalorder %s30, 1
      %p242 = por %p240, %p241
      %p244 = scmp.ne.s32.totalorder %s229, %s243
      %p245 = scmp.eq.s32.totalorder %s30, 0
      %p246 = por %p244, %p245
      %s248 = sadd.s32 %s247, 1
      %p251 = scmp.eq.s32.totalorder %s24, 1
      %p252 = scmp.ne.s32.totalorder %s247, %s249
      %p253 = scmp.eq.s32.totalorder %s24, 0
      %p254 = por %p252, %p253
      %p255 = scmp.ne.s32.totalorder %s247, %s249
      %p256 = scmp.eq.s32.totalorder %s29, 1
      %p257 = por %p255, %p256
      %p258 = scmp.ne.s32.totalorder %s249, %s250
      %p259 = scmp.eq.s32.totalorder %s29, 0
      %p260 = por %p258, %p259
      %p261 = scmp.ne.s32.totalorder %s249, %s250
      %p262 = scmp.eq.s32.totalorder %s30, 1
      %p263 = por %p261, %p262
      %p265 = scmp.ne.s32.totalorder %s250, %s264
      %p266 = scmp.eq.s32.totalorder %s30, 0
      %p267 = por %p265, %p266
      %s269 = sadd.s32 %s268, 1
      %p272 = scmp.eq.s32.totalorder %s24, 1
      %p273 = scmp.ne.s32.totalorder %s268, %s270
      %p274 = scmp.eq.s32.totalorder %s24, 0
      %p275 = por %p273, %p274
      %p276 = scmp.ne.s32.totalorder %s268, %s270
      %p277 = scmp.eq.s32.totalorder %s29, 1
      %p278 = por %p276, %p277
      %p279 = scmp.ne.s32.totalorder %s270, %s271
      %p280 = scmp.eq.s32.totalorder %s29, 0
      %p281 = por %p279, %p280
      %p282 = scmp.ne.s32.totalorder %s270, %s271
      %p283 = scmp.eq.s32.totalorder %s30, 1
      %p284 = por %p282, %p283
      %p286 = scmp.ne.s32.totalorder %s271, %s285
      %p287 = scmp.eq.s32.totalorder %s30, 0
      %p288 = por %p286, %p287
      %s290 = sadd.s32 %s289, 1
      %p293 = scmp.eq.s32.totalorder %s24, 1
      %p294 = scmp.ne.s32.totalorder %s289, %s291
      %p295 = scmp.eq.s32.totalorder %s24, 0
      %p296 = por %p294, %p295
      %p297 = scmp.ne.s32.totalorder %s289, %s291
      %p298 = scmp.eq.s32.totalorder %s29, 1
      %p299 = por %p297, %p298
      %p300 = scmp.ne.s32.totalorder %s291, %s292
      %p301 = scmp.eq.s32.totalorder %s29, 0
      %p302 = por %p300, %p301
      %p303 = scmp.ne.s32.totalorder %s291, %s292
      %p304 = scmp.eq.s32.totalorder %s30, 1
      %p305 = por %p303, %p304
      %p307 = scmp.ne.s32.totalorder %s292, %s306
      %p308 = scmp.eq.s32.totalorder %s30, 0
      %p309 = por %p307, %p308
      %s310 = ssub.s32 %s24, %s31
      %p311 = scmp.eq.s32.totalorder %s310, 0
      %s313 = sadd.s32 %s312, 1
      %s314 = scalar_select %p311, %s312, %s313
      %p317 = pneg %p311
      %p318 = scmp.eq.s32.totalorder %s24, 1
      %p319 = por %p317, %p318
      %p320 = scmp.ne.s32.totalorder %s312, %s315
      %p321 = scmp.eq.s32.totalorder %s24, 0
      %p322 = por %p320, %p321
      %p323 = scmp.ne.s32.totalorder %s312, %s315
      %p324 = scmp.eq.s32.totalorder %s29, 1
      %p325 = por %p323, %p324
      %p326 = scmp.ne.s32.totalorder %s315, %s316
      %p327 = scmp.eq.s32.totalorder %s29, 0
      %p328 = por %p326, %p327
      %p329 = scmp.ne.s32.totalorder %s315, %s316
      %p330 = scmp.eq.s32.totalorder %s30, 1
      %p331 = por %p329, %p330
      %p333 = scmp.ne.s32.totalorder %s316, %s332
      %p334 = scmp.eq.s32.totalorder %s30, 0
      %p335 = por %p333, %p334
      %p336 = scmp.le.s32.totalorder 1, %s24
      %p337 = scmp.lt.s32.totalorder %s24, 3
      %p338 = pnand %p336, %p337
      %p339 = pneg %p338
      // Predicated region
      $region9: #{tpu_custom_call.1} parent=5 // pred_check
        _
      $region10: #{tpu_custom_call.1} parent=5 // pred_check_branch
        %341 = sbr.rel (%p338) target = $region12
      $region11: #{tpu_custom_call.1} parent=5 // pred_region
        %s342 = ssub.s32 %s24, 1
        // Predicated region
        $region13: #{tpu_custom_call.1} parent=11 // pred_check
          %p343 = pneg %p71
        $region14: #{tpu_custom_call.1} parent=11 // pred_check_branch
          %345 = sbr.rel (%p343) target = $region16
        $region15: #{tpu_custom_call.1} parent=11 // pred_region
          %347 = vsyncadd [#allocation3], 0
          %s348 = sshll.u32 %s1, 4
          %s349 = int_to_ptr.hbm [resolvable:$true] %s348
          %s350 = sshll.u32 [#allocation2], 4
          %s351 = int_to_ptr.vmem [resolvable:$true] %s350
          %356 = dma.hbm_to_vmem [thread:$0]  %s349, 4096, %s351, [#allocation3], 128, 128, 8
        $region16: #{tpu_custom_call.1} parent=11 // pred_fallthru
          _
        // Predicated region
        $region17: #{tpu_custom_call.1} parent=11 // pred_check
          %p357 = pneg %p92
        $region18: #{tpu_custom_call.1} parent=11 // pred_check_branch
          %359 = sbr.rel (%p357) target = $region20
        $region19: #{tpu_custom_call.1} parent=11 // pred_region
          _
        $region20: #{tpu_custom_call.1} parent=11 // pred_fallthru
          _
        // Predicated region
        $region21: #{tpu_custom_call.1} parent=11 // pred_check
          %p360 = pneg %p113
        $region22: #{tpu_custom_call.1} parent=11 // pred_check_branch
          %362 = sbr.rel (%p360) target = $region24
        $region23: #{tpu_custom_call.1} parent=11 // pred_region
          _
        $region24: #{tpu_custom_call.1} parent=11 // pred_fallthru
          _
        // Predicated region
        $region25: #{tpu_custom_call.1} parent=11 // pred_check
          %p363 = pneg %p134
        $region26: #{tpu_custom_call.1} parent=11 // pred_check_branch
          %365 = sbr.rel (%p363) target = $region28
        $region27: #{tpu_custom_call.1} parent=11 // pred_region
          _
        $region28: #{tpu_custom_call.1} parent=11 // pred_fallthru
          _
        // Predicated region
        $region29: #{tpu_custom_call.1} parent=11 // pred_check
          %p366 = pneg %p155
        $region30: #{tpu_custom_call.1} parent=11 // pred_check_branch
          %368 = sbr.rel (%p366) target = $region32
        $region31: #{tpu_custom_call.1} parent=11 // pred_region
          _
        $region32: #{tpu_custom_call.1} parent=11 // pred_fallthru
          _
        // Predicated region
        $region33: #{tpu_custom_call.1} parent=11 // pred_check
          %p369 = pneg %p176
        $region34: #{tpu_custom_call.1} parent=11 // pred_check_branch
          %371 = sbr.rel (%p369) target = $region36
        $region35: #{tpu_custom_call.1} parent=11 // pred_region
          _
        $region36: #{tpu_custom_call.1} parent=11 // pred_fallthru
          _
        // Predicated region
        $region37: #{tpu_custom_call.1} parent=11 // pred_check
          %p372 = pneg %p197
        $region38: #{tpu_custom_call.1} parent=11 // pred_check_branch
          %374 = sbr.rel (%p372) target = $region40
        $region39: #{tpu_custom_call.1} parent=11 // pred_region
          _
        $region40: #{tpu_custom_call.1} parent=11 // pred_fallthru
          _
        // Predicated region
        $region41: #{tpu_custom_call.1} parent=11 // pred_check
          %p375 = pneg %p218
        $region42: #{tpu_custom_call.1} parent=11 // pred_check_branch
          %377 = sbr.rel (%p375) target = $region44
        $region43: #{tpu_custom_call.1} parent=11 // pred_region
          _
        $region44: #{tpu_custom_call.1} parent=11 // pred_fallthru
          _
        // Predicated region
        $region45: #{tpu_custom_call.1} parent=11 // pred_check
          %p378 = pneg %p239
        $region46: #{tpu_custom_call.1} parent=11 // pred_check_branch
          %380 = sbr.rel (%p378) target = $region48
        $region47: #{tpu_custom_call.1} parent=11 // pred_region
          _
        $region48: #{tpu_custom_call.1} parent=11 // pred_fallthru
          _
        // Predicated region
        $region49: #{tpu_custom_call.1} parent=11 // pred_check
          %p381 = pneg %p260
        $region50: #{tpu_custom_call.1} parent=11 // pred_check_branch
          %383 = sbr.rel (%p381) target = $region52
        $region51: #{tpu_custom_call.1} parent=11 // pred_region
          %385 = vsyncadd [#allocation6], 0
          %s387 = sshll.u32 %s10, 4
          %s388 = int_to_ptr.hbm [resolvable:$true] %s387
          %s389 = sshll.u32 [#allocation5], 4
          %s390 = int_to_ptr.vmem [resolvable:$true] %s389
          %392 = dma.hbm_to_vmem [thread:$0]  %s388, 128, %s390, [#allocation6]
        $region52: #{tpu_custom_call.1} parent=11 // pred_fallthru
          _
        // Predicated region
        $region53: #{tpu_custom_call.1} parent=11 // pred_check
          %p393 = pneg %p281
        $region54: #{tpu_custom_call.1} parent=11 // pred_check_branch
          %395 = sbr.rel (%p393) target = $region56
        $region55: #{tpu_custom_call.1} parent=11 // pred_region
          %397 = vsyncadd [#allocation6], 0
          %s399 = sshll.u32 %s11, 4
          %s400 = int_to_ptr.hbm [resolvable:$true] %s399
          %s401 = sshll.u32 [#allocation7], 4
          %s402 = int_to_ptr.vmem [resolvable:$true] %s401
          %404 = dma.hbm_to_vmem [thread:$0]  %s400, 128, %s402, [#allocation6]
        $region56: #{tpu_custom_call.1} parent=11 // pred_fallthru
          _
        // Predicated region
        $region57: #{tpu_custom_call.1} parent=11 // pred_check
          %p405 = pneg %p302
        $region58: #{tpu_custom_call.1} parent=11 // pred_check_branch
          %407 = sbr.rel (%p405) target = $region60
        $region59: #{tpu_custom_call.1} parent=11 // pred_region
          _
        $region60: #{tpu_custom_call.1} parent=11 // pred_fallthru
          _
      $region12: #{tpu_custom_call.1} parent=5 // pred_fallthru
        _
      %p408 = scmp.lt.s32.totalorder %s24, 2
      // Predicated region
      $region61: #{tpu_custom_call.1} parent=5 // pred_check
        %p409 = pneg %p408
      $region62: #{tpu_custom_call.1} parent=5 // pred_check_branch
        %411 = sbr.rel (%p409) target = $region64
      $region63: #{tpu_custom_call.1} parent=5 // pred_region
        // Predicated region
        $region65: #{tpu_custom_call.1} parent=63 // pred_check
          %p412 = pneg %p44
        $region66: #{tpu_custom_call.1} parent=63 // pred_check_branch
          %414 = sbr.rel (%p412) target = $region68
        $region67: #{tpu_custom_call.1} parent=63 // pred_region
          %p415 = scmp.lt.s32.totalorder %s24, 1
          %s416 = scalar_select %p415, %s24, 1
          %s417 = smul.addr %s416, 2
          %s418 = smul.addr %s417, 4
          %s419 = scalar_lea.vmem %s0, %s418
        $region68: #{tpu_custom_call.1} parent=63 // pred_fallthru
          _
      $region64: #{tpu_custom_call.1} parent=5 // pred_fallthru
        _
      %p420 = scmp.le.s32.totalorder 1, %s24
      %p421 = scmp.lt.s32.totalorder %s24, 3
      %p422 = pnand %p420, %p421
      %p423 = pneg %p422
      // Predicated region
      $region69: #{tpu_custom_call.1} parent=5 // pred_check
        _
      $region70: #{tpu_custom_call.1} parent=5 // pred_check_branch
        %425 = sbr.rel (%p422) target = $region72
      $region71: #{tpu_custom_call.1} parent=5 // pred_region
        %s426 = ssub.s32 %s24, 1
        // Predicated region
        $region73: #{tpu_custom_call.1} parent=71 // pred_check
          %p427 = pneg %p71
        $region74: #{tpu_custom_call.1} parent=71 // pred_check_branch
          %429 = sbr.rel (%p427) target = $region76
        $region75: #{tpu_custom_call.1} parent=71 // pred_region
          %431 = dma.done [#allocation3], 4096
        $region76: #{tpu_custom_call.1} parent=71 // pred_fallthru
          _
        // Predicated region
        $region77: #{tpu_custom_call.1} parent=71 // pred_check
          %p432 = pneg %p260
        $region78: #{tpu_custom_call.1} parent=71 // pred_check_branch
          %434 = sbr.rel (%p432) target = $region80
        $region79: #{tpu_custom_call.1} parent=71 // pred_region
          %436 = dma.done [#allocation6], 128
        $region80: #{tpu_custom_call.1} parent=71 // pred_fallthru
          _
        // Predicated region
        $region81: #{tpu_custom_call.1} parent=71 // pred_check
          %p437 = pneg %p281
        $region82: #{tpu_custom_call.1} parent=71 // pred_check_branch
          %439 = sbr.rel (%p437) target = $region84
        $region83: #{tpu_custom_call.1} parent=71 // pred_region
          %441 = dma.done [#allocation6], 128
        $region84: #{tpu_custom_call.1} parent=71 // pred_fallthru
          _
        %p442 = scmp.lt.s32.totalorder %s29, 1
        %s443 = scalar_select %p442, %s29, 1
        %s444 = smul.addr %s443, 2
        %s445 = smul.addr %s444, 4
        %s446 = scalar_lea.vmem %s0, %s445
        %p447 = pneg %p50
        %p448 = pneg %p47
        %p449 = pneg %p71
        %p450 = pneg %p68
        %p451 = pneg %p92
        %p452 = pneg %p89
        %p453 = pneg %p113
        %p454 = pneg %p110
        %p455 = pneg %p134
        %p456 = pneg %p131
        %p457 = pneg %p155
        %p458 = pneg %p152
        %p459 = pneg %p176
        %p460 = pneg %p173
        %p461 = pneg %p197
        %p462 = pneg %p194
        %p463 = pneg %p218
        %p464 = pneg %p215
        %p465 = pneg %p239
        %p466 = pneg %p236
        %p467 = pneg %p260
        %p468 = pneg %p257
        %p469 = pneg %p281
        %p470 = pneg %p278
        %p471 = pneg %p302
        %p472 = pneg %p299
        %p473 = pneg %p328
        %p474 = pneg %p325
        %s475 = sand.u32 %s315, 1
        %s476 = scalar_lea.sflag [#allocation4], %s475
        %s477 = sand.u32 %s315, 1
        %s478 = smul.addr %s477, 8
        %s479 = scalar_lea.vmem [#allocation8], %s478
        %p480 = scmp.lt.s32.totalorder %s29, 1
        %s481 = scalar_select %p480, %s29, 1
        %s482 = smul.addr %s481, 2
        %s483 = smul.addr %s482, 4
        %s484 = scalar_lea.vmem %s0, %s483
        %v485 = vld [vmem:[%s2] sm:$0x1f]
        %v486 = vld [vmem:[%s484] sm:$0xff]
        %v487 = vld [vmem:[#allocation2] sm:$0xff]
        %v488 = vld [vmem:[#allocation2 + $0x8] sm:$0xff]
        %v489 = vld [vmem:[#allocation2 + $0x10] sm:$0xff]
        %v490 = vld [vmem:[#allocation2 + $0x18] sm:$0xff]
        %v491 = vld [vmem:[#allocation2 + $0x20] sm:$0xff]
        %v492 = vld [vmem:[#allocation2 + $0x28] sm:$0xff]
        %v493 = vld [vmem:[#allocation2 + $0x30] sm:$0xff]
        %v494 = vld [vmem:[#allocation2 + $0x38] sm:$0xff]
        %v495 = vld [vmem:[#allocation2 + $0x40] sm:$0xff]
        %v496 = vld [vmem:[#allocation2 + $0x48] sm:$0xff]
        %v497 = vld [vmem:[#allocation2 + $0x50] sm:$0xff]
        %v498 = vld [vmem:[#allocation2 + $0x58] sm:$0xff]
        %v499 = vld [vmem:[#allocation2 + $0x60] sm:$0xff]
        %v500 = vld [vmem:[#allocation2 + $0x68] sm:$0xff]
        %v501 = vld [vmem:[#allocation2 + $0x70] sm:$0xff]
        %v502 = vld [vmem:[#allocation2 + $0x78] sm:$0xff]
        %v503 = vld [vmem:[#allocation2 + $0x80] sm:$0xff]
        %v504 = vld [vmem:[#allocation2 + $0x88] sm:$0xff]
        %v505 = vld [vmem:[#allocation2 + $0x90] sm:$0xff]
        %v506 = vld [vmem:[#allocation2 + $0x98] sm:$0xff]
        %v507 = vld [vmem:[#allocation2 + $0xa0] sm:$0xff]
        %v508 = vld [vmem:[#allocation2 + $0xa8] sm:$0xff]
        %v509 = vld [vmem:[#allocation2 + $0xb0] sm:$0xff]
        %v510 = vld [vmem:[#allocation2 + $0xb8] sm:$0xff]
        %v511 = vld [vmem:[#allocation2 + $0xc0] sm:$0xff]
        %v512 = vld [vmem:[#allocation2 + $0xc8] sm:$0xff]
        %v513 = vld [vmem:[#allocation2 + $0xd0] sm:$0xff]
        %v514 = vld [vmem:[#allocation2 + $0xd8] sm:$0xff]
        %v515 = vld [vmem:[#allocation2 + $0xe0] sm:$0xff]
        %v516 = vld [vmem:[#allocation2 + $0xe8] sm:$0xff]
        %v517 = vld [vmem:[#allocation2 + $0xf0] sm:$0xff]
        %v518 = vld [vmem:[#allocation2 + $0xf8] sm:$0xff]
        %520 = vst [vmem:[#allocation1] ss:$2 sm:$0xff] %v486
        %v521 = vld.sshfl [vmem:[#allocation1] sm:$0xff pattern:$0x75316420]
        %v522 = vld.sshfl [vmem:[#allocation1 + $0x8] sm:$0xff pattern:$0x75316420]
        %525 = vmatpush.msra.mxu0 %v502
        %526 = vmatpush.msra.mxu0 %v501
        %527 = vmatpush.msra.mxu0 %v500
        %528 = vmatpush.msra.mxu0 %v499
        %529 = vmatpush.msra.mxu0 %v498
        %530 = vmatpush.msra.mxu0 %v497
        %531 = vmatpush.msra.mxu0 %v496
        %532 = vmatpush.msra.mxu0 %v495
        %533 = vmatpush.msra.mxu0 %v494
        %534 = vmatpush.msra.mxu0 %v493
        %535 = vmatpush.msra.mxu0 %v492
        %536 = vmatpush.msra.mxu0 %v491
        %537 = vmatpush.msra.mxu0 %v490
        %538 = vmatpush.msra.mxu0 %v489
        %539 = vmatpush.msra.mxu0 %v488
        %540 = vmatpush.msra.mxu0 %v487
        %541 = vmatmul.f32.gmra.mxu0 %v521
        %v542 = vpop.f32.mrf.mxu0
        %v543 = vadd.f32 0.0, %v542
        %544 = vdwg.mxu0
        %545 = vmatpush.msra.mxu0 %v518
        %546 = vmatpush.msra.mxu0 %v517
        %547 = vmatpush.msra.mxu0 %v516
        %548 = vmatpush.msra.mxu0 %v515
        %549 = vmatpush.msra.mxu0 %v514
        %550 = vmatpush.msra.mxu0 %v513
        %551 = vmatpush.msra.mxu0 %v512
        %552 = vmatpush.msra.mxu0 %v511
        %553 = vmatpush.msra.mxu0 %v510
        %554 = vmatpush.msra.mxu0 %v509
        %555 = vmatpush.msra.mxu0 %v508
        %556 = vmatpush.msra.mxu0 %v507
        %557 = vmatpush.msra.mxu0 %v506
        %558 = vmatpush.msra.mxu0 %v505
        %559 = vmatpush.msra.mxu0 %v504
        %560 = vmatpush.msra.mxu0 %v503
        %561 = vmatmul.f32.gmra.mxu0 %v522
        %v562 = vpop.f32.mrf.mxu0
        %v563 = vadd.f32 %v543, %v562
        %564 = vdwg.mxu0
        %v565 = vld [vmem:[%s3] sm:$0xff]
        %v566 = vld [vmem:[%s4] sm:$0xff]
        %v567 = vld [vmem:[%s5] sm:$0xff]
        %v568 = vld [vmem:[%s6] sm:$0xff]
        %v569 = vld [vmem:[%s7] sm:$0xff]
        %571 = vset.pattern.permute.xlu0 0
        %572 = vperm.xlu0 %571, %v566
        %v573 = vpop.permute.xlu0 %572
        %vm575 = vcmask 31744
        %v577 = vsel %vm575, %v565, 0
        %vm579 = vcmask 1043456
        %v581 = vsel %vm579, %v563, 0
        %583 = vmatpush.msra.mxu0 0.0
        %584 = vmatpush.msra.mxu0 0.0
        %585 = vmatpush.msra.mxu0 0.0
        %586 = vmatpush.msra.mxu0 0.0
        %587 = vmatpush.msra.mxu0 0.0
        %588 = vmatpush.msra.mxu0 0.0
        %589 = vmatpush.msra.mxu0 0.0
        %590 = vmatpush.msra.mxu0 0.0
        %591 = vmatpush.msra.mxu0 0.0
        %592 = vmatpush.msra.mxu0 0.0
        %593 = vmatpush.msra.mxu0 0.0
        %594 = vmatpush.msra.mxu0 0.0
        %595 = vmatpush.msra.mxu0 0.0
        %596 = vmatpush.msra.mxu0 0.0
        %597 = vmatpush.msra.mxu0 0.0
        %598 = vmatpush.msra.mxu0 %v581
        %599 = vmatmul.f32.gmra.mxu0 %v577
        %v600 = vpop.f32.mrf.mxu0
        %v601 = vadd.f32 %v573, %v600
        %602 = vdwg.mxu0
        %v603 = vmax.f32 %v601, 0.0
        %v604 = vperm.slane %v485, 0
        %v605 = vmul.f32 %v603, %v604
        %606 = vrot.lane.b32.xlu0 %v605, 1
        %v607 = vpop.permute.xlu0 %606
        %v608 = vperm.slane %v485, 1
        %v609 = vmul.f32 %v607, %v608
        %610 = vrot.lane.b32.xlu0 %v605, 127
        %v611 = vpop.permute.xlu0 %610
        %v612 = vperm.slane %v485, 2
        %v613 = vmul.f32 %v611, %v612
        %615 = vset.pattern.permute.xlu0 0
        %616 = vperm.xlu0 %615, %v567
        %v617 = vpop.permute.xlu0 %616
        %v619 = vmul.f32 %v609, %v617
        %620 = vset.pattern.permute.xlu0 1
        %621 = vperm.xlu0 %620, %v567
        %v622 = vpop.permute.xlu0 %621
        %v624 = vmul.f32 %v605, %v622
        %v625 = vadd.f32 %v619, %v624
        %626 = vset.pattern.permute.xlu0 2
        %627 = vperm.xlu0 %626, %v567
        %v628 = vpop.permute.xlu0 %627
        %v630 = vmul.f32 %v613, %v628
        %v631 = vadd.f32 %v625, %v630
        %632 = vset.pattern.permute.xlu0 3
        %633 = vperm.xlu0 %632, %v567
        %v634 = vpop.permute.xlu0 %633
        %v636 = vadd.f32 %v631, %v634
        %v637 = vmax.f32 %v636, 0.0
        %638 = vrot.lane.b32.xlu0 %v637, 8
        %v639 = vpop.permute.xlu0 %638
        %v640 = vperm.slane %v485, 3
        %v641 = vmul.f32 %v639, %v640
        %642 = vrot.lane.b32.xlu0 %v637, 120
        %v643 = vpop.permute.xlu0 %642
        %v644 = vperm.slane %v485, 4
        %v645 = vmul.f32 %v643, %v644
        %646 = vset.pattern.permute.xlu0 4
        %647 = vperm.xlu0 %646, %v567
        %v648 = vpop.permute.xlu0 %647
        %v650 = vmul.f32 %v641, %v648
        %651 = vset.pattern.permute.xlu0 5
        %652 = vperm.xlu0 %651, %v567
        %v653 = vpop.permute.xlu0 %652
        %v655 = vmul.f32 %v637, %v653
        %v656 = vadd.f32 %v650, %v655
        %657 = vset.pattern.permute.xlu0 6
        %658 = vperm.xlu0 %657, %v567
        %v659 = vpop.permute.xlu0 %658
        %v661 = vmul.f32 %v645, %v659
        %v662 = vadd.f32 %v656, %v661
        %663 = vset.pattern.permute.xlu0 7
        %664 = vperm.xlu0 %663, %v567
        %v665 = vpop.permute.xlu0 %664
        %v667 = vadd.f32 %v662, %v665
        %v668 = vmax.f32 %v667, 0.0
        %670 = vset.pattern.permute.xlu0 0
        %671 = vperm.xlu0 %670, %v569
        %v672 = vpop.permute.xlu0 %671
        %vm674 = vcmask 130048
        %v676 = vsel %vm674, %v568, 0
        %678 = vmatpush.msra.mxu0 0.0
        %679 = vmatpush.msra.mxu0 0.0
        %680 = vmatpush.msra.mxu0 0.0
        %681 = vmatpush.msra.mxu0 0.0
        %682 = vmatpush.msra.mxu0 0.0
        %683 = vmatpush.msra.mxu0 0.0
        %684 = vmatpush.msra.mxu0 0.0
        %685 = vmatpush.msra.mxu0 0.0
        %686 = vmatpush.msra.mxu0 0.0
        %687 = vmatpush.msra.mxu0 0.0
        %688 = vmatpush.msra.mxu0 0.0
        %689 = vmatpush.msra.mxu0 0.0
        %690 = vmatpush.msra.mxu0 0.0
        %691 = vmatpush.msra.mxu0 0.0
        %692 = vmatpush.msra.mxu0 %v668
        %693 = vmatpush.msra.mxu0 %v605
        %694 = vmatmul.f32.gmra.mxu0 %v676
        %v695 = vpop.f32.mrf.mxu0
        %v696 = vadd.f32 %v672, %v695
        %697 = vdwg.mxu0
        %v698 = vmax.f32 %v696, 0.0
        %v699 = vld [vmem:[%s8] sm:$0xff]
        %v700 = vld [vmem:[%s9] sm:$0xff]
        %v701 = vld [vmem:[#allocation5] sm:$0xff]
        %v702 = vld [vmem:[#allocation7] sm:$0xff]
        %v703 = vld [vmem:[%s12] sm:$0xff]
        %705 = vset.pattern.permute.xlu0 0
        %706 = vperm.xlu0 %705, %v700
        %v707 = vpop.permute.xlu0 %706
        %vm709 = vcmask 64512
        %v711 = vsel %vm709, %v699, 0
        %713 = vmatpush.msra.mxu0 0.0
        %714 = vmatpush.msra.mxu0 0.0
        %715 = vmatpush.msra.mxu0 0.0
        %716 = vmatpush.msra.mxu0 0.0
        %717 = vmatpush.msra.mxu0 0.0
        %718 = vmatpush.msra.mxu0 0.0
        %719 = vmatpush.msra.mxu0 0.0
        %720 = vmatpush.msra.mxu0 0.0
        %721 = vmatpush.msra.mxu0 0.0
        %722 = vmatpush.msra.mxu0 0.0
        %723 = vmatpush.msra.mxu0 0.0
        %724 = vmatpush.msra.mxu0 0.0
        %725 = vmatpush.msra.mxu0 0.0
        %726 = vmatpush.msra.mxu0 0.0
        %727 = vmatpush.msra.mxu0 0.0
        %728 = vmatpush.msra.mxu0 %v698
        %729 = vmatmul.f32.gmra.mxu0 %v711
        %v730 = vpop.f32.mrf.mxu0
        %v731 = vadd.f32 %v707, %v730
        %732 = vdwg.mxu0
        %v733 = vmax.f32 %v731, 0.0
        %v734 = vmul.f32 %v733, %v604
        %735 = vrot.lane.b32.xlu0 %v734, 1
        %v736 = vpop.permute.xlu0 %735
        %v737 = vmul.f32 %v736, %v608
        %738 = vrot.lane.b32.xlu0 %v734, 127
        %v739 = vpop.permute.xlu0 %738
        %v740 = vmul.f32 %v739, %v612
        %742 = vset.pattern.permute.xlu0 0
        %743 = vperm.xlu0 %742, %v701
        %v744 = vpop.permute.xlu0 %743
        %v746 = vmul.f32 %v737, %v744
        %747 = vset.pattern.permute.xlu0 1
        %748 = vperm.xlu0 %747, %v701
        %v749 = vpop.permute.xlu0 %748
        %v751 = vmul.f32 %v734, %v749
        %v752 = vadd.f32 %v746, %v751
        %753 = vset.pattern.permute.xlu0 2
        %754 = vperm.xlu0 %753, %v701
        %v755 = vpop.permute.xlu0 %754
        %v757 = vmul.f32 %v740, %v755
        %v758 = vadd.f32 %v752, %v757
        %759 = vset.pattern.permute.xlu0 3
        %760 = vperm.xlu0 %759, %v701
        %v761 = vpop.permute.xlu0 %760
        %v763 = vadd.f32 %v758, %v761
        %v764 = vmax.f32 %v763, 0.0
        %765 = vrot.lane.b32.xlu0 %v764, 8
        %v766 = vpop.permute.xlu0 %765
        %v767 = vmul.f32 %v766, %v640
        %768 = vrot.lane.b32.xlu0 %v764, 120
        %v769 = vpop.permute.xlu0 %768
        %v770 = vmul.f32 %v769, %v644
        %771 = vset.pattern.permute.xlu0 4
        %772 = vperm.xlu0 %771, %v701
        %v773 = vpop.permute.xlu0 %772
        %v775 = vmul.f32 %v767, %v773
        %776 = vset.pattern.permute.xlu0 5
        %777 = vperm.xlu0 %776, %v701
        %v778 = vpop.permute.xlu0 %777
        %v780 = vmul.f32 %v764, %v778
        %v781 = vadd.f32 %v775, %v780
        %782 = vset.pattern.permute.xlu0 6
        %783 = vperm.xlu0 %782, %v701
        %v784 = vpop.permute.xlu0 %783
        %v786 = vmul.f32 %v770, %v784
        %v787 = vadd.f32 %v781, %v786
        %788 = vset.pattern.permute.xlu0 7
        %789 = vperm.xlu0 %788, %v701
        %v790 = vpop.permute.xlu0 %789
        %v792 = vadd.f32 %v787, %v790
        %v793 = vmax.f32 %v792, 0.0
        %795 = vset.pattern.permute.xlu0 0
        %796 = vperm.xlu0 %795, %v703
        %v797 = vpop.permute.xlu0 %796
        %v800 = vsel %vm674, %v702, 0
        %802 = vmatpush.msra.mxu0 0.0
        %803 = vmatpush.msra.mxu0 0.0
        %804 = vmatpush.msra.mxu0 0.0
        %805 = vmatpush.msra.mxu0 0.0
        %806 = vmatpush.msra.mxu0 0.0
        %807 = vmatpush.msra.mxu0 0.0
        %808 = vmatpush.msra.mxu0 0.0
        %809 = vmatpush.msra.mxu0 0.0
        %810 = vmatpush.msra.mxu0 0.0
        %811 = vmatpush.msra.mxu0 0.0
        %812 = vmatpush.msra.mxu0 0.0
        %813 = vmatpush.msra.mxu0 0.0
        %814 = vmatpush.msra.mxu0 0.0
        %815 = vmatpush.msra.mxu0 0.0
        %816 = vmatpush.msra.mxu0 %v793
        %817 = vmatpush.msra.mxu0 %v734
        %818 = vmatmul.f32.gmra.mxu0 %v800
        %v819 = vpop.f32.mrf.mxu0
        %v820 = vadd.f32 %v797, %v819
        %821 = vdwg.mxu0
        %v822 = vmax.f32 %v820, 0.0
        %823 = vst [vmem:[%s479] sm:$0xff] %v822
        %s824 = sand.u32 %s315, 1
        %s825 = scalar_lea.sflag [#allocation4], %s824
        %s826 = sand.u32 %s315, 1
        %s827 = smul.addr %s826, 8
        %s828 = scalar_lea.vmem [#allocation8], %s827
        // Predicated region
        $region85: #{tpu_custom_call.1} parent=71 // pred_check
          %p829 = pneg %p325
        $region86: #{tpu_custom_call.1} parent=71 // pred_check_branch
          %831 = sbr.rel (%p829) target = $region88
        $region87: #{tpu_custom_call.1} parent=71 // pred_region
          %833 = vsyncadd %s825, 0
          %s834 = smul.addr %s29, 8
          %s835 = scalar_lea.hbm %s13, %s834
          %s837 = sshll.u32 %s828, 4
          %s838 = int_to_ptr.vmem [resolvable:$true] %s837
          %s839 = sshll.u32 %s835, 4
          %s840 = int_to_ptr.hbm [resolvable:$true] %s839
          %842 = dma.vmem_to_hbm [thread:$0]  %s838, 128, %s840, %s825
        $region88: #{tpu_custom_call.1} parent=71 // pred_fallthru
          _
      $region72: #{tpu_custom_call.1} parent=5 // pred_fallthru
        _
      %p843 = scmp.le.s32.totalorder 2, %s24
      // Predicated region
      $region89: #{tpu_custom_call.1} parent=5 // pred_check
        %p844 = pneg %p843
      $region90: #{tpu_custom_call.1} parent=5 // pred_check_branch
        %846 = sbr.rel (%p844) target = $region92
      $region91: #{tpu_custom_call.1} parent=5 // pred_region
        %s847 = ssub.s32 %s24, 2
        // Predicated region
        $region93: #{tpu_custom_call.1} parent=91 // pred_check
          %p848 = pneg %p331
        $region94: #{tpu_custom_call.1} parent=91 // pred_check_branch
          %850 = sbr.rel (%p848) target = $region96
        $region95: #{tpu_custom_call.1} parent=91 // pred_region
          %s851 = sand.u32 %s316, 1
          %s852 = scalar_lea.sflag [#allocation4], %s851
          %s853 = sand.u32 %s316, 1
          %s854 = smul.addr %s853, 8
          %s855 = scalar_lea.vmem [#allocation8], %s854
          %857 = dma.done %s852, 128
        $region96: #{tpu_custom_call.1} parent=91 // pred_fallthru
          _
      $region92: #{tpu_custom_call.1} parent=5 // pred_fallthru
        _
    $region6: #{tpu_custom_call.1} parent=1 // loop_footer
      %s28 = sadd.s32 1, %s24
    $region7: #{tpu_custom_call.1} parent=1 // loop_footer_branch
      %23 = sbr.rel target = $region3
    $region8: #{tpu_custom_call.1} parent=1 // loop_exit
      _
    %858 = vsyncpa [#allocation3], 1
    %s859 = scalar_lea.sflag [#allocation3], 1
    %860 = vsyncpa %s859, 1
    %861 = vsyncpa [#allocation6], 1
    %862 = vsyncpa [#allocation4], 1
    %s863 = scalar_lea.sflag [#allocation4], 1
    %864 = vsyncpa %s863, 1

</llo_original>
